<compile_context>
chip_gen: v5e
topology: v5e:2x2
jax: 0.10.0
libtpu: 0.0.40
codegen_flags: <defaults>
</compile_context>

<pallas_src>
import functools
import math

import jax
import jax.numpy as jnp
from jax.experimental import pallas as pl
from jax.experimental.pallas import tpu as pltpu


_VMEM_LIMIT_BYTES = 48 * 1024 * 1024
_LN_EPS = 1e-5


# ----------------------------- small helpers ------------------------------

def _pick_tile(dim, preferred, align=128):
    """Largest tile <= preferred dividing dim, preferring multiples of align."""
    if dim <= preferred:
        return dim
    t = (preferred // align) * align
    while t >= align:
        if dim % t == 0:
            return t
        t -= align
    # Fallback (shape not align-friendly): halve until it divides.
    t = preferred
    while dim % t != 0:
        t //= 2
    return max(t, 1)


def _layernorm_f32(x, gamma, beta):
    mean = jnp.mean(x, axis=-1, keepdims=True)
    var = jnp.mean(jnp.square(x - mean), axis=-1, keepdims=True)
    return (x - mean) * jax.lax.rsqrt(var + _LN_EPS) * gamma + beta


def _gelu_tanh(x):
    c = math.sqrt(2.0 / math.pi)
    return 0.5 * x * (1.0 + jnp.tanh(c * (x + 0.044715 * x * x * x)))


# --------------------- kernel 1: LayerNorm + matmul ------------------------
# out[TM, TN] = (maybe gelu)( LN(x[TM, C]) @ W[C, TN] + bias[TN] )
# LN(x) is computed only at j == 0 and cached in a bf16 VMEM scratch.

def _ln_matmul_kernel(apply_gelu, x_ref, g_ref, b_ref, w_ref, bias_ref,
                      o_ref, ln_ref):
    @pl.when(pl.program_id(1) == 0)
    def _():
        x = x_ref[...].astype(jnp.float32)                   # (TM, C)
        h = _layernorm_f32(x, g_ref[...], b_ref[...])        # f32 stats
        ln_ref[...] = h.astype(jnp.bfloat16)

    acc = jnp.dot(ln_ref[...], w_ref[...],                   # bf16 x bf16 -> f32
                  preferred_element_type=jnp.float32)
    acc = acc + bias_ref[...]
    if apply_gelu:
        acc = _gelu_tanh(acc)
    o_ref[...] = acc.astype(o_ref.dtype)


def _ln_matmul(x, gamma, beta, w_bf16, bias, *, apply_gelu, out_dtype,
               tm=256, tn=512):
    M, K = x.shape
    N = w_bf16.shape[1]
    tm = _pick_tile(M, tm)
    tn = _pick_tile(N, tn)
    return pl.pallas_call(
        functools.partial(_ln_matmul_kernel, apply_gelu),
        out_shape=jax.ShapeDtypeStruct((M, N), out_dtype),
        grid=(M // tm, N // tn),
        in_specs=[
            pl.BlockSpec((tm, K), lambda i, j: (i, 0)),
            pl.BlockSpec((1, K), lambda i, j: (0, 0)),
            pl.BlockSpec((1, K), lambda i, j: (0, 0)),
            pl.BlockSpec((K, tn), lambda i, j: (0, j)),
            pl.BlockSpec((1, tn), lambda i, j: (0, j)),
        ],
        out_specs=pl.BlockSpec((tm, tn), lambda i, j: (i, j)),
        scratch_shapes=[pltpu.VMEM((tm, K), jnp.bfloat16)],   # cached LN(x)
        compiler_params=pltpu.CompilerParams(
            # j must stay sequential per-core so the j==0 LN-cache guard holds.
            dimension_semantics=("parallel", "arbitrary"),
            vmem_limit_bytes=_VMEM_LIMIT_BYTES),
    )(x, gamma, beta, w_bf16, bias)


# ----------- kernel 2: K-tiled matmul + bias + residual add ----------------
# out[TM, TN] = res[TM, TN] + sum_k y[TM, TK] @ W[TK, TN] + bias[TN]

def _matmul_res_kernel(y_ref, w_ref, bias_ref, res_ref, o_ref, acc_ref):
    k = pl.program_id(2)

    @pl.when(k == 0)
    def _():
        acc_ref[...] = jnp.zeros(acc_ref.shape, acc_ref.dtype)

    acc_ref[...] += jnp.dot(y_ref[...], w_ref[...],
                            preferred_element_type=jnp.float32)

    @pl.when(k == pl.num_programs(2) - 1)
    def _():
        o_ref[...] = (acc_ref[...] + bias_ref[...] +
                      res_ref[...].astype(jnp.float32)).astype(o_ref.dtype)


def _matmul_bias_residual(y, w_bf16, bias, res, *, tm=256, tn=512, tk=512):
    M, K = y.shape
    N = w_bf16.shape[1]
    tm = _pick_tile(M, tm)
    tn = _pick_tile(N, tn)
    tk = _pick_tile(K, tk)
    return pl.pallas_call(
        _matmul_res_kernel,
        out_shape=jax.ShapeDtypeStruct((M, N), res.dtype),
        grid=(M // tm, N // tn, K // tk),
        in_specs=[
            pl.BlockSpec((tm, tk), lambda i, j, k: (i, k)),
            pl.BlockSpec((tk, tn), lambda i, j, k: (k, j)),
            pl.BlockSpec((1, tn), lambda i, j, k: (0, j)),
            pl.BlockSpec((tm, tn), lambda i, j, k: (i, j)),
        ],
        out_specs=pl.BlockSpec((tm, tn), lambda i, j, k: (i, j)),
        scratch_shapes=[pltpu.VMEM((tm, tn), jnp.float32)],
        compiler_params=pltpu.CompilerParams(
            dimension_semantics=("parallel", "parallel", "arbitrary"),
            vmem_limit_bytes=_VMEM_LIMIT_BYTES),
    )(y, w_bf16, bias, res)


# ---------------- kernel 3: causal flash attention --------------------------
# grid = (B, n_head, T//TQ, T//TKV); q/k/v blocks are sliced directly out of
# the packed (B, T, 3C) qkv tensor via the BlockSpec index maps.
# q columns of w_qkv/b_qkv are pre-scaled by 1/sqrt(hd) in the wrapper.

def _flash_kernel(q_ref, k_ref, v_ref, o_ref, m_sc, l_sc, acc_sc):
    qi = pl.program_id(2)
    ki = pl.program_id(3)
    tq = q_ref.shape[1]
    tkv = k_ref.shape[1]

    @pl.when(ki == 0)
    def _():
        m_sc[...] = jnp.full(m_sc.shape, -jnp.inf, m_sc.dtype)
        l_sc[...] = jnp.zeros(l_sc.shape, l_sc.dtype)
        acc_sc[...] = jnp.zeros(acc_sc.shape, acc_sc.dtype)

    def step(masked):
        q = q_ref[0]                                                 # (TQ, hd) bf16
        k = k_ref[0]                                                 # (TKV, hd) bf16
        # Contract head dim of both operands -> no explicit transpose.
        s = jax.lax.dot_general(q, k, (((1,), (1,)), ((), ())),
                                preferred_element_type=jnp.float32)  # (TQ, TKV)
        if masked:
            rows = qi * tq + jax.lax.broadcasted_iota(jnp.int32, (tq, tkv), 0)
            cols = ki * tkv + jax.lax.broadcasted_iota(jnp.int32, (tq, tkv), 1)
            s = jnp.where(rows >= cols, s, -1e30)

        m_prev = m_sc[...]
        m_new = jnp.maximum(m_prev, jnp.max(s, axis=-1, keepdims=True))
        alpha = jnp.exp(m_prev - m_new)
        p = jnp.exp(s - m_new)                                       # f32
        l_sc[...] = alpha * l_sc[...] + jnp.sum(p, axis=-1, keepdims=True)
        pv = jax.lax.dot_general(p.astype(jnp.bfloat16), v_ref[0],
                                 (((1,), (0,)), ((), ())),
                                 preferred_element_type=jnp.float32)  # (TQ, hd)
        acc_sc[...] = alpha * acc_sc[...] + pv
        m_sc[...] = m_new

    # Tile fully below the diagonal: no mask work at all.
    fully_visible = qi * tq >= ki * tkv + (tkv - 1)
    # Tile straddling the diagonal: build the iota mask.
    overlaps = jnp.logical_and(jnp.logical_not(fully_visible),
                               qi * tq + (tq - 1) >= ki * tkv)

    @pl.when(fully_visible)
    def _():
        step(masked=False)

    @pl.when(overlaps)
    def _():
        step(masked=True)

    @pl.when(ki == pl.num_programs(3) - 1)
    def _():
        inv_l = pl.reciprocal(l_sc[...], approx=True)
        o_ref[0] = (acc_sc[...] * inv_l).astype(o_ref.dtype)


def _flash_attention(qkv, n_head, *, tq=256, tkv=256):
    B, T, three_c = qkv.shape
    C = three_c // 3
    hd = C // n_head
    tq = _pick_tile(T, tq)
    tkv = _pick_tile(T, tkv)

    # Clamp K/V block index into the causal region: fully-masked kv steps
    # re-reference the already-resident block, so their DMA is skipped.
    def kv_block(qi, ki):
        return jnp.minimum(ki, (qi * tq + tq - 1) // tkv)

    return pl.pallas_call(
        _flash_kernel,
        out_shape=jax.ShapeDtypeStruct((B, T, C), jnp.bfloat16),
        grid=(B, n_head, T // tq, T // tkv),
        in_specs=[
            # q block of head h lives at columns [h*hd, (h+1)*hd)
            pl.BlockSpec((1, tq, hd), lambda b, h, qi, ki: (b, qi, h)),
            # k block at columns [C + h*hd, ...)
            pl.BlockSpec((1, tkv, hd),
                         lambda b, h, qi, ki: (b, kv_block(qi, ki), n_head + h)),
            # v block at columns [2C + h*hd, ...)
            pl.BlockSpec((1, tkv, hd),
                         lambda b, h, qi, ki: (b, kv_block(qi, ki), 2 * n_head + h)),
        ],
        out_specs=pl.BlockSpec((1, tq, hd), lambda b, h, qi, ki: (b, qi, h)),
        scratch_shapes=[
            pltpu.VMEM((tq, 1), jnp.float32),   # running max
            pltpu.VMEM((tq, 1), jnp.float32),   # running denom
            pltpu.VMEM((tq, hd), jnp.float32),  # un-normalized output
        ],
        compiler_params=pltpu.CompilerParams(
            dimension_semantics=("parallel", "parallel", "parallel", "arbitrary"),
            vmem_limit_bytes=_VMEM_LIMIT_BYTES),
    )(qkv, qkv, qkv)


# --------------------------- one-time weight prep ---------------------------

def prepare_params(params, n_head):
    """Cast weights to bf16 once and fold 1/sqrt(hd) into the q columns."""
    C = params["w_qkv"].shape[0]
    hd = C // n_head
    scale = 1.0 / math.sqrt(hd)
    col_scale = jnp.concatenate([jnp.full((C,), scale, jnp.float32),
                                 jnp.ones((2 * C,), jnp.float32)])
    prepped = dict(params)
    prepped["w_qkv"] = (params["w_qkv"] * col_scale).astype(jnp.bfloat16)
    prepped["b_qkv"] = params["b_qkv"] * col_scale
    prepped["w_ap"] = params["w_ap"].astype(jnp.bfloat16)
    prepped["w_fc"] = params["w_fc"].astype(jnp.bfloat16)
    prepped["w_mp"] = params["w_mp"].astype(jnp.bfloat16)
    return prepped


# ------------------------------- wrapper -----------------------------------

def gpt_block(x, prepped, n_head):
    """Forward pass of Block. `prepped` must come from prepare_params."""
    B, T, C = x.shape
    M = B * T
    xf = x.reshape(M, C)

    # ---- attention branch ----
    qkv = _ln_matmul(xf, prepped["g1"], prepped["b1"], prepped["w_qkv"],
                     prepped["b_qkv"], apply_gelu=False,
                     out_dtype=jnp.bfloat16)                          # (M, 3C)
    y = _flash_attention(qkv.reshape(B, T, 3 * C), n_head)            # (B, T, C) bf16
    x2 = _matmul_bias_residual(y.reshape(M, C), prepped["w_ap"],
                               prepped["b_ap"], xf)                   # (M, C) f32

    # ---- MLP branch ----
    h = _ln_matmul(x2, prepped["g2"], prepped["b2"], prepped["w_fc"],
                   prepped["b_fc"], apply_gelu=True,
                   out_dtype=jnp.bfloat16)                            # (M, 4C)
    out = _matmul_bias_residual(h, prepped["w_mp"], prepped["b_mp"], x2)  # f32
    return out.reshape(B, T, C)


# --------------------------- pure-JAX reference -----------------------------

def gpt_block_ref(x, params, n_head):
    B, T, C = x.shape
    hd = C // n_head
    scale = 1.0 / math.sqrt(hd)

    h = _layernorm_f32(x, params["g1"], params["b1"])
    qkv = h @ params["w_qkv"] + params["b_qkv"]
    q, k, v = qkv[..., :C], qkv[..., C:2 * C], qkv[..., 2 * C:]
    q = q.reshape(B, T, n_head, hd).transpose(0, 2, 1, 3)
    k = k.reshape(B, T, n_head, hd).transpose(0, 2, 1, 3)
    v = v.reshape(B, T, n_head, hd).transpose(0, 2, 1, 3)
    s = jnp.einsum("bhqd,bhkd->bhqk", q, k) * scale
    causal = jnp.tril(jnp.ones((T, T), dtype=bool))
    s = jnp.where(causal, s, -1e30)
    p = jax.nn.softmax(s, axis=-1)
    y = jnp.einsum("bhqk,bhkd->bhqd", p, v)
    y = y.transpose(0, 2, 1, 3).reshape(B, T, C)
    y = y @ params["w_ap"] + params["b_ap"]
    x = x + y

    h = _layernorm_f32(x, params["g2"], params["b2"])
    h = h @ params["w_fc"] + params["b_fc"]
    h = _gelu_tanh(h)
    h = h @ params["w_mp"] + params["b_mp"]
    return x + h


# --------------------------------- main -------------------------------------

if __name__ == "__main__":
    # Small but tile-friendly GPT-style shapes: head_dim = 128 so q/k/v head
    # blocks are lane-aligned.
    B, T, C, n_head = 2, 256, 256, 2

    key = jax.random.PRNGKey(0)
    keys = jax.random.split(key, 8)

    params = {
        # ln_1
        "g1": jnp.ones((1, C), jnp.float32),
        "b1": jnp.zeros((1, C), jnp.float32),
        # attn.c_attn : C -> 3C
        "w_qkv": 0.02 * jax.random.normal(keys[0], (C, 3 * C), jnp.float32),
        "b_qkv": 0.01 * jax.random.normal(keys[1], (1, 3 * C), jnp.float32),
        # attn.c_proj : C -> C
        "w_ap": 0.02 * jax.random.normal(keys[2], (C, C), jnp.float32),
        "b_ap": 0.01 * jax.random.normal(keys[3], (1, C), jnp.float32),
        # ln_2
        "g2": jnp.ones((1, C), jnp.float32),
        "b2": jnp.zeros((1, C), jnp.float32),
        # mlp.c_fc : C -> 4C
        "w_fc": 0.02 * jax.random.normal(keys[4], (C, 4 * C), jnp.float32),
        "b_fc": 0.01 * jax.random.normal(keys[5], (1, 4 * C), jnp.float32),
        # mlp.c_proj : 4C -> C
        "w_mp": 0.02 * jax.random.normal(keys[6], (4 * C, C), jnp.float32),
        "b_mp": 0.01 * jax.random.normal(keys[7], (1, C), jnp.float32),
    }

    x = jax.random.normal(jax.random.PRNGKey(42), (B, T, C), jnp.float32)

    prepped = jax.tree_util.tree_map(jax.block_until_ready,
                                     prepare_params(params, n_head))

    out = jax.block_until_ready(gpt_block(x, prepped, n_head))
    ref = jax.block_until_ready(gpt_block_ref(x, params, n_head))

    assert out.shape == (B, T, C)
    max_diff = jnp.max(jnp.abs(out - ref))
    # bf16 MXU inputs with f32 accumulation: loose-but-meaningful tolerance.
    assert jnp.allclose(out, ref, rtol=2e-2, atol=2e-2), \
        f"max abs diff {max_diff}"

    print("KERNEL_OK")
</pallas_src>

<mosaic_0001>
module attributes {stable_mosaic.version = 11 : i64} {
  func.func @_ln_matmul_kernel(%arg0: i32, %arg1: i32, %arg2: memref<256x256xf32, #tpu.memory_space<vmem>>, %arg3: memref<1x256xf32, #tpu.memory_space<vmem>>, %arg4: memref<1x256xf32, #tpu.memory_space<vmem>>, %arg5: memref<256x384xbf16, #tpu.memory_space<vmem>>, %arg6: memref<1x384xf32, #tpu.memory_space<vmem>>, %arg7: memref<256x384xbf16, #tpu.memory_space<vmem>>, %arg8: memref<256x256xbf16, #tpu.memory_space<vmem>>) attributes {dimension_semantics = [#tpu.dimension_semantics<parallel>, #tpu.dimension_semantics<arbitrary>], iteration_bounds = array<i64: 2, 2>, scalar_prefetch = 0 : i64, scratch_operands = 1 : i64, tpu.core_type = #tpu.core_type<tc>, window_params = [{transform_indices = @transform_0, window_bounds = array<i64: 256, 256>}, {pipeline_mode = #tpu.pipeline_mode<synchronous>, transform_indices = @transform_1, window_bounds = array<i64: 1, 256>}, {pipeline_mode = #tpu.pipeline_mode<synchronous>, transform_indices = @transform_2, window_bounds = array<i64: 1, 256>}, {transform_indices = @transform_3, window_bounds = array<i64: 256, 384>}, {transform_indices = @transform_4, window_bounds = array<i64: 1, 384>}, {transform_indices = @transform_5, window_bounds = array<i64: 256, 384>}]} {
    %c0_i32 = arith.constant 0 : i32
    %0 = arith.cmpi eq, %arg1, %c0_i32 : i32
    %1 = arith.extui %0 : i1 to i32
    %c0_i32_0 = arith.constant 0 : i32
    %2 = arith.cmpi ne, %1, %c0_i32_0 : i32
    scf.if %2 {
      %c0_8 = arith.constant 0 : index
      %c0_9 = arith.constant 0 : index
      %11 = vector.load %arg2[%c0_8, %c0_9] : memref<256x256xf32, #tpu.memory_space<vmem>>, vector<256x256xf32>
      %c0_10 = arith.constant 0 : index
      %c0_11 = arith.constant 0 : index
      %12 = vector.load %arg3[%c0_10, %c0_11] : memref<1x256xf32, #tpu.memory_space<vmem>>, vector<1x256xf32>
      %c0_12 = arith.constant 0 : index
      %c0_13 = arith.constant 0 : index
      %13 = vector.load %arg4[%c0_12, %c0_13] : memref<1x256xf32, #tpu.memory_space<vmem>>, vector<1x256xf32>
      %cst_14 = arith.constant dense<0.000000e+00> : vector<256xf32>
      %14 = vector.multi_reduction <add>, %11, %cst_14 [1] : vector<256x256xf32> to vector<256xf32>
      %15 = vector.shape_cast %14 : vector<256xf32> to vector<256x1xf32>
      %cst_15 = arith.constant 2.560000e+02 : f32
      %16 = vector.broadcast %cst_15 : f32 to vector<256x1xf32>
      %17 = arith.divf %15, %16 : vector<256x1xf32>
      %18 = vector.broadcast %17 : vector<256x1xf32> to vector<256x256xf32>
      %19 = arith.subf %11, %18 : vector<256x256xf32>
      %20 = arith.mulf %19, %19 : vector<256x256xf32>
      %cst_16 = arith.constant dense<0.000000e+00> : vector<256xf32>
      %21 = vector.multi_reduction <add>, %20, %cst_16 [1] : vector<256x256xf32> to vector<256xf32>
      %22 = vector.shape_cast %21 : vector<256xf32> to vector<256x1xf32>
      %cst_17 = arith.constant 2.560000e+02 : f32
      %23 = vector.broadcast %cst_17 : f32 to vector<256x1xf32>
      %24 = arith.divf %22, %23 : vector<256x1xf32>
      %25 = vector.broadcast %17 : vector<256x1xf32> to vector<256x256xf32>
      %26 = arith.subf %11, %25 : vector<256x256xf32>
      %cst_18 = arith.constant 9.99999974E-6 : f32
      %27 = vector.broadcast %cst_18 : f32 to vector<256x1xf32>
      %28 = arith.addf %24, %27 : vector<256x1xf32>
      %29 = math.rsqrt %28 : vector<256x1xf32>
      %30 = vector.broadcast %29 : vector<256x1xf32> to vector<256x256xf32>
      %31 = arith.mulf %26, %30 : vector<256x256xf32>
      %32 = vector.broadcast %12 : vector<1x256xf32> to vector<256x256xf32>
      %33 = arith.mulf %31, %32 : vector<256x256xf32>
      %34 = vector.broadcast %13 : vector<1x256xf32> to vector<256x256xf32>
      %35 = arith.addf %33, %34 : vector<256x256xf32>
      %36 = arith.truncf %35 : vector<256x256xf32> to vector<256x256xbf16>
      %c0_19 = arith.constant 0 : index
      %c0_20 = arith.constant 0 : index
      %37 = vector.load %arg8[%c0_19, %c0_20] : memref<256x256xbf16, #tpu.memory_space<vmem>>, vector<256x256xbf16>
      tpu.vector_store %arg8[%c0_19, %c0_20], %36 {strides = array<i32>} : memref<256x256xbf16, #tpu.memory_space<vmem>>, vector<256x256xbf16>,
    } else {
    }
    %c0 = arith.constant 0 : index
    %c0_1 = arith.constant 0 : index
    %3 = vector.load %arg8[%c0, %c0_1] : memref<256x256xbf16, #tpu.memory_space<vmem>>, vector<256x256xbf16>
    %c0_2 = arith.constant 0 : index
    %c0_3 = arith.constant 0 : index
    %4 = vector.load %arg5[%c0_2, %c0_3] : memref<256x384xbf16, #tpu.memory_space<vmem>>, vector<256x384xbf16>
    %cst = arith.constant dense<0.000000e+00> : vector<256x384xf32>
    %5 = tpu.matmul %3, %4, %cst {dimension_numbers = #tpu.dot_dimension_numbers<[1], [0], [0], [1], [0, 0, 1, 1], [], []>} : vector<256x256xbf16>, vector<256x384xbf16>, vector<256x384xf32> -> vector<256x384xf32>
    %c0_4 = arith.constant 0 : index
    %c0_5 = arith.constant 0 : index
    %6 = vector.load %arg6[%c0_4, %c0_5] : memref<1x384xf32, #tpu.memory_space<vmem>>, vector<1x384xf32>
    %7 = vector.broadcast %6 : vector<1x384xf32> to vector<256x384xf32>
    %8 = arith.addf %5, %7 : vector<256x384xf32>
    %9 = arith.truncf %8 : vector<256x384xf32> to vector<256x384xbf16>
    %c0_6 = arith.constant 0 : index
    %c0_7 = arith.constant 0 : index
    %10 = vector.load %arg7[%c0_6, %c0_7] : memref<256x384xbf16, #tpu.memory_space<vmem>>, vector<256x384xbf16>
    tpu.vector_store %arg7[%c0_6, %c0_7], %9 {strides = array<i32>} : memref<256x384xbf16, #tpu.memory_space<vmem>>, vector<256x384xbf16>,
    return
  }
  func.func @transform_0(%arg0: i32, %arg1: i32) -> (i32, i32) {
    %c0_i32 = arith.constant 0 : i32
    %c0_i32_0 = arith.constant 0 : i32
    return %arg0, %c0_i32 : i32, i32
  }
  func.func @transform_1(%arg0: i32, %arg1: i32) -> (i32, i32) {
    %c0_i32 = arith.constant 0 : i32
    %c0_i32_0 = arith.constant 0 : i32
    %c0_i32_1 = arith.constant 0 : i32
    return %c0_i32, %c0_i32_0 : i32, i32
  }
  func.func @transform_2(%arg0: i32, %arg1: i32) -> (i32, i32) {
    %c0_i32 = arith.constant 0 : i32
    %c0_i32_0 = arith.constant 0 : i32
    %c0_i32_1 = arith.constant 0 : i32
    return %c0_i32, %c0_i32_0 : i32, i32
  }
  func.func @transform_3(%arg0: i32, %arg1: i32) -> (i32, i32) {
    %c0_i32 = arith.constant 0 : i32
    %c0_i32_0 = arith.constant 0 : i32
    return %c0_i32, %arg1 : i32, i32
  }
  func.func @transform_4(%arg0: i32, %arg1: i32) -> (i32, i32) {
    %c0_i32 = arith.constant 0 : i32
    %c0_i32_0 = arith.constant 0 : i32
    return %c0_i32, %arg1 : i32, i32
  }
  func.func @transform_5(%arg0: i32, %arg1: i32) -> (i32, i32) {
    %c0_i32 = arith.constant 0 : i32
    return %arg0, %arg1 : i32, i32
  }
}

</mosaic_0001>

<llo_original>
// kernel: tpu_custom_call.1
$region0: #{tpu_custom_call.1}
  #allocation0 [shape = 'u32[]', space=smem, size = 0x4, offset = 0x4, fixed_abs, tag = 'smem constant byte address 0x4 - core index']
  #allocation1 [shape = 'u32[72,128]{1,0:T(1,128)}', space=vmem, size = 0x9000, scoped, tag = 'internal scratch']
  #allocation2 [shape = 'bf16[256,256]{1,0:T(8,128)(2,1)}', space=vmem, size = 0x20000, scoped, tag = 'scratch operand']
  %s0 = inlined_call_operand.hbm [shape: f32[512,256], index: 0, kind: input, shape index: {}]
  %s1 = inlined_call_operand.hbm [shape: f32[1,256], index: 1, kind: input, shape index: {}]
  %s2 = inlined_call_operand.hbm [shape: f32[1,256], index: 2, kind: input, shape index: {}]
  %s3 = inlined_call_operand.hbm [shape: bf16[256,768], index: 3, kind: input, shape index: {}]
  %s4 = inlined_call_operand.hbm [shape: f32[1,768], index: 4, kind: input, shape index: {}]
  %s5 = inlined_call_operand.hbm [shape: bf16[512,768], index: 5, kind: output, shape index: {}]
  %s6 = sld [smem:[#allocation0]]
  $region77: #{tpu_custom_call.1} parent=0
    _
  %s8 = ssub.s32 1, %s6
  %s9 = scalar_select 0, %s8, %s6
  $region1: #{tpu_custom_call.1} parent=0
    #allocation3 [shape = 'u8[524288]{0}', space=vmem, size = 0x80000, scoped, tag = 'input window, operand 0']
    #allocation4 [shape = 's32[2]{0}', space=sflag, size = 0x8, scoped, tag = 'scoped memory for tpu_custom_call.1']
    #allocation5 [shape = 's32[2]{0}', space=sflag, size = 0x8, scoped, tag = 'scoped memory for tpu_custom_call.1']
    #allocation6 [shape = 'u8[1024]{0}', space=vmem, size = 0x400, scoped, tag = 'input window, operand 1, single buffered']
    #allocation7 [shape = 's32[1]{0}', space=sflag, size = 0x4, scoped, tag = 'scoped memory for tpu_custom_call.1']
    #allocation8 [shape = 'u8[1024]{0}', space=vmem, size = 0x400, scoped, tag = 'input window, operand 2, single buffered']
    #allocation9 [shape = 'u8[393216]{0}', space=vmem, size = 0x60000, scoped, tag = 'input window, operand 3']
    #allocation10 [shape = 's32[2]{0}', space=sflag, size = 0x8, scoped, tag = 'scoped memory for tpu_custom_call.1']
    #allocation11 [shape = 'u8[3072]{0}', space=vmem, size = 0xc00, scoped, tag = 'input window, operand 4']
    #allocation12 [shape = 'u8[393216]{0}', space=vmem, size = 0x60000, scoped, tag = 'output window, operand 0']
    %10 = vsyncpa [#allocation4], 0
    %s11 = scalar_lea.sflag [#allocation4], 1
    %12 = vsyncpa %s11, 0
    %13 = vsyncpa [#allocation7], 0
    %14 = vsyncpa [#allocation10], 0
    %s15 = scalar_lea.sflag [#allocation10], 1
    %16 = vsyncpa %s15, 0
    %17 = vsyncpa [#allocation5], 0
    %s18 = scalar_lea.sflag [#allocation5], 1
    %19 = vsyncpa %s18, 0
    loop: start=0, step=1, limit=6
    $region2: #{tpu_custom_call.1} parent=1 // loop_pre_header
      _
    $region3: #{tpu_custom_call.1} parent=1 // loop_header
      %s21 = sphi 0, %s25
      %p22 = scmp.ge.s32.totalorder %s21, 6
      %s28 = sphi 0, %s40
      %s29 = sphi 0, %s36
      %s30 = sphi 0, %s28
      %s31 = sphi 0, %s29
      %s32 = sphi 0, %s30
      %s33 = sphi 0, %s31
      %s43 = sphi 0, %s45
      %s46 = sphi 0, %s43
      %s47 = sphi 0, %s46
      %s63 = sphi 0, %s47
      %s67 = sphi 0, %s67
      %s69 = sphi 0, %s67
      %s70 = sphi 0, %s69
      %s84 = sphi 0, %s70
      %s88 = sphi 0, %s88
      %s90 = sphi 0, %s88
      %s91 = sphi 0, %s90
      %s105 = sphi 0, %s91
      %s111 = sphi 0, %s113
      %s114 = sphi 0, %s111
      %s115 = sphi 0, %s114
      %s131 = sphi 0, %s115
      %s137 = sphi 0, %s139
      %s140 = sphi 0, %s137
      %s141 = sphi 0, %s140
      %s157 = sphi 0, %s141
      %s165 = sphi 0, %s167
      %s168 = sphi 0, %s165
      %s169 = sphi 0, %s168
      %s185 = sphi 0, %s169
    $region4: #{tpu_custom_call.1} parent=1 // loop_header_branch
      %24 = sbr.rel (%p22) target = $region8
    $region5: #{tpu_custom_call.1} parent=1 // loop_body
      %s26 = ssub.s32 %s21, 1
      %s27 = ssub.s32 %s21, 2
      %s34 = sadd.s32 1, %s29
      %p35 = scmp.ge.s32.totalorder %s34, 2
      %s36 = scalar_select %p35, 0, %s34
      %s37 = sadd.s32 1, %s28
      %s38 = scalar_select %p35, %s37, %s28
      %p39 = scmp.ge.s32.totalorder %s38, 2
      %s40 = scalar_select %p39, 0, %s38
      %s41 = ssub.s32 %s28, %s40
      %p42 = scmp.eq.s32.totalorder %s41, 0
      %s44 = sadd.s32 %s43, 1
      %s45 = scalar_select %p42, %s43, %s44
      %p48 = pneg %p42
      %p49 = scmp.eq.s32.totalorder %s21, 3
      %p50 = por %p48, %p49
      %p51 = scmp.ne.s32.totalorder %s43, %s46
      %p52 = scmp.eq.s32.totalorder %s21, 0
      %p53 = por %p51, %p52
      %p54 = scmp.ne.s32.totalorder %s43, %s46
      %p55 = scmp.eq.s32.totalorder %s26, 3
      %p56 = por %p54, %p55
      %p57 = scmp.ne.s32.totalorder %s46, %s47
      %p58 = scmp.eq.s32.totalorder %s26, 0
      %p59 = por %p57, %p58
      %p60 = scmp.ne.s32.totalorder %s46, %s47
      %p61 = scmp.eq.s32.totalorder %s27, 3
      %p62 = por %p60, %p61
      %p64 = scmp.ne.s32.totalorder %s47, %s63
      %p65 = scmp.eq.s32.totalorder %s27, 0
      %p66 = por %p64, %p65
      %s68 = sadd.s32 %s67, 1
      %p71 = scmp.eq.s32.totalorder %s21, 3
      %p72 = scmp.ne.s32.totalorder %s67, %s69
      %p73 = scmp.eq.s32.totalorder %s21, 0
      %p74 = por %p72, %p73
      %p75 = scmp.ne.s32.totalorder %s67, %s69
      %p76 = scmp.eq.s32.totalorder %s26, 3
      %p77 = por %p75, %p76
      %p78 = scmp.ne.s32.totalorder %s69, %s70
      %p79 = scmp.eq.s32.totalorder %s26, 0
      %p80 = por %p78, %p79
      %p81 = scmp.ne.s32.totalorder %s69, %s70
      %p82 = scmp.eq.s32.totalorder %s27, 3
      %p83 = por %p81, %p82
      %p85 = scmp.ne.s32.totalorder %s70, %s84
      %p86 = scmp.eq.s32.totalorder %s27, 0
      %p87 = por %p85, %p86
      %s89 = sadd.s32 %s88, 1
      %p92 = scmp.eq.s32.totalorder %s21, 3
      %p93 = scmp.ne.s32.totalorder %s88, %s90
      %p94 = scmp.eq.s32.totalorder %s21, 0
      %p95 = por %p93, %p94
      %p96 = scmp.ne.s32.totalorder %s88, %s90
      %p97 = scmp.eq.s32.totalorder %s26, 3
      %p98 = por %p96, %p97
      %p99 = scmp.ne.s32.totalorder %s90, %s91
      %p100 = scmp.eq.s32.totalorder %s26, 0
      %p101 = por %p99, %p100
      %p102 = scmp.ne.s32.totalorder %s90, %s91
      %p103 = scmp.eq.s32.totalorder %s27, 3
      %p104 = por %p102, %p103
      %p106 = scmp.ne.s32.totalorder %s91, %s105
      %p107 = scmp.eq.s32.totalorder %s27, 0
      %p108 = por %p106, %p107
      %s109 = ssub.s32 %s29, %s36
      %p110 = scmp.eq.s32.totalorder %s109, 0
      %s112 = sadd.s32 %s111, 1
      %s113 = scalar_select %p110, %s111, %s112
      %p116 = pneg %p110
      %p117 = scmp.eq.s32.totalorder %s21, 3
      %p118 = por %p116, %p117
      %p119 = scmp.ne.s32.totalorder %s111, %s114
      %p120 = scmp.eq.s32.totalorder %s21, 0
      %p121 = por %p119, %p120
      %p122 = scmp.ne.s32.totalorder %s111, %s114
      %p123 = scmp.eq.s32.totalorder %s26, 3
      %p124 = por %p122, %p123
      %p125 = scmp.ne.s32.totalorder %s114, %s115
      %p126 = scmp.eq.s32.totalorder %s26, 0
      %p127 = por %p125, %p126
      %p128 = scmp.ne.s32.totalorder %s114, %s115
      %p129 = scmp.eq.s32.totalorder %s27, 3
      %p130 = por %p128, %p129
      %p132 = scmp.ne.s32.totalorder %s115, %s131
      %p133 = scmp.eq.s32.totalorder %s27, 0
      %p134 = por %p132, %p133
      %s135 = ssub.s32 %s29, %s36
      %p136 = scmp.eq.s32.totalorder %s135, 0
      %s138 = sadd.s32 %s137, 1
      %s139 = scalar_select %p136, %s137, %s138
      %p142 = pneg %p136
      %p143 = scmp.eq.s32.totalorder %s21, 3
      %p144 = por %p142, %p143
      %p145 = scmp.ne.s32.totalorder %s137, %s140
      %p146 = scmp.eq.s32.totalorder %s21, 0
      %p147 = por %p145, %p146
      %p148 = scmp.ne.s32.totalorder %s137, %s140
      %p149 = scmp.eq.s32.totalorder %s26, 3
      %p150 = por %p148, %p149
      %p151 = scmp.ne.s32.totalorder %s140, %s141
      %p152 = scmp.eq.s32.totalorder %s26, 0
      %p153 = por %p151, %p152
      %p154 = scmp.ne.s32.totalorder %s140, %s141
      %p155 = scmp.eq.s32.totalorder %s27, 3
      %p156 = por %p154, %p155
      %p158 = scmp.ne.s32.totalorder %s141, %s157
      %p159 = scmp.eq.s32.totalorder %s27, 0
      %p160 = por %p158, %p159
      %s161 = ssub.s32 %s28, %s40
      %s162 = ssub.s32 %s29, %s36
      %s163 = sor.u32 %s161, %s162
      %p164 = scmp.eq.s32.totalorder %s163, 0
      %s166 = sadd.s32 %s165, 1
      %s167 = scalar_select %p164, %s165, %s166
      %p170 = pneg %p164
      %p171 = scmp.eq.s32.totalorder %s21, 3
      %p172 = por %p170, %p171
      %p173 = scmp.ne.s32.totalorder %s165, %s168
      %p174 = scmp.eq.s32.totalorder %s21, 0
      %p175 = por %p173, %p174
      %p176 = scmp.ne.s32.totalorder %s165, %s168
      %p177 = scmp.eq.s32.totalorder %s26, 3
      %p178 = por %p176, %p177
      %p179 = scmp.ne.s32.totalorder %s168, %s169
      %p180 = scmp.eq.s32.totalorder %s26, 0
      %p181 = por %p179, %p180
      %p182 = scmp.ne.s32.totalorder %s168, %s169
      %p183 = scmp.eq.s32.totalorder %s27, 3
      %p184 = por %p182, %p183
      %p186 = scmp.ne.s32.totalorder %s169, %s185
      %p187 = scmp.eq.s32.totalorder %s27, 0
      %p188 = por %p186, %p187
      %p189 = scmp.le.s32.totalorder 1, %s21
      %p190 = scmp.lt.s32.totalorder %s21, 5
      %p191 = pnand %p189, %p190
      %p192 = pneg %p191
      // Predicated region
      $region9: #{tpu_custom_call.1} parent=5 // pred_check
        _
      $region10: #{tpu_custom_call.1} parent=5 // pred_check_branch
        %194 = sbr.rel (%p191) target = $region12
      $region11: #{tpu_custom_call.1} parent=5 // pred_region
        %s195 = ssub.s32 %s21, 1
        // Predicated region
        $region13: #{tpu_custom_call.1} parent=11 // pred_check
          %p196 = pneg %p80
        $region14: #{tpu_custom_call.1} parent=11 // pred_check_branch
          %198 = sbr.rel (%p196) target = $region16
        $region15: #{tpu_custom_call.1} parent=11 // pred_region
          %200 = vsyncadd [#allocation7], 0
          %s202 = sshll.u32 %s1, 4
          %s203 = int_to_ptr.hbm [resolvable:$true] %s202
          %s204 = sshll.u32 [#allocation6], 4
          %s205 = int_to_ptr.vmem [resolvable:$true] %s204
          %207 = dma.hbm_to_vmem [thread:$0]  %s203, 32, %s205, [#allocation7]
        $region16: #{tpu_custom_call.1} parent=11 // pred_fallthru
          _
        // Predicated region
        $region17: #{tpu_custom_call.1} parent=11 // pred_check
          %p208 = pneg %p101
        $region18: #{tpu_custom_call.1} parent=11 // pred_check_branch
          %210 = sbr.rel (%p208) target = $region20
        $region19: #{tpu_custom_call.1} parent=11 // pred_region
          %212 = vsyncadd [#allocation7], 0
          %s214 = sshll.u32 %s2, 4
          %s215 = int_to_ptr.hbm [resolvable:$true] %s214
          %s216 = sshll.u32 [#allocation8], 4
          %s217 = int_to_ptr.vmem [resolvable:$true] %s216
          %219 = dma.hbm_to_vmem [thread:$0]  %s215, 32, %s217, [#allocation7]
        $region20: #{tpu_custom_call.1} parent=11 // pred_fallthru
          _
      $region12: #{tpu_custom_call.1} parent=5 // pred_fallthru
        _
      %p220 = scmp.lt.s32.totalorder %s21, 4
      // Predicated region
      $region21: #{tpu_custom_call.1} parent=5 // pred_check
        %p221 = pneg %p220
      $region22: #{tpu_custom_call.1} parent=5 // pred_check_branch
        %223 = sbr.rel (%p221) target = $region24
      $region23: #{tpu_custom_call.1} parent=5 // pred_region
        // Predicated region
        $region25: #{tpu_custom_call.1} parent=23 // pred_check
          %p224 = pneg %p53
        $region26: #{tpu_custom_call.1} parent=23 // pred_check_branch
          %226 = sbr.rel (%p224) target = $region28
        $region27: #{tpu_custom_call.1} parent=23 // pred_region
          %s227 = sand.u32 %s43, 1
          %s228 = scalar_lea.sflag [#allocation4], %s227
          %s229 = sand.u32 %s43, 1
          %s230 = smul.addr %s229, 512
          %s231 = scalar_lea.vmem [#allocation3], %s230
          %s232 = smul.u32 32, %s28
          %234 = vsyncadd %s228, 0
          %s235 = smul.addr %s232, 2
          %s236 = smul.addr %s235, 8
          %s237 = scalar_lea.hbm %s0, %s236
          %s238 = sshll.u32 %s237, 4
          %s239 = int_to_ptr.hbm [resolvable:$true] %s238
          %s240 = sshll.u32 %s231, 4
          %s241 = int_to_ptr.vmem [resolvable:$true] %s240
          %246 = dma.hbm_to_vmem [thread:$0]  %s239, 8192, %s241, %s228, 256, 256, 16
        $region28: #{tpu_custom_call.1} parent=23 // pred_fallthru
          _
        // Predicated region
        $region29: #{tpu_custom_call.1} parent=23 // pred_check
          %p247 = pneg %p121
        $region30: #{tpu_custom_call.1} parent=23 // pred_check_branch
          %249 = sbr.rel (%p247) target = $region32
        $region31: #{tpu_custom_call.1} parent=23 // pred_region
          %s250 = sand.u32 %s21, 1
          %s251 = scalar_lea.sflag [#allocation10], %s250
          %s252 = sand.u32 %s111, 1
          %s253 = smul.addr %s252, 384
          %s254 = scalar_lea.vmem [#allocation9], %s253
          %s255 = smul.u32 3, %s29
          %257 = vsyncadd %s251, 0
          %s258 = smul.addr %s255, 4
          %s259 = scalar_lea.hbm %s3, %s258
          %s260 = sshll.u32 %s259, 4
          %s261 = int_to_ptr.hbm [resolvable:$true] %s260
          %s262 = sshll.u32 %s254, 4
          %s263 = int_to_ptr.vmem [resolvable:$true] %s262
          %268 = dma.hbm_to_vmem [thread:$0]  %s261, 6144, %s263, %s251, 384, 192, 12
        $region32: #{tpu_custom_call.1} parent=23 // pred_fallthru
          _
        // Predicated region
        $region33: #{tpu_custom_call.1} parent=23 // pred_check
          %p269 = pneg %p147
        $region34: #{tpu_custom_call.1} parent=23 // pred_check_branch
          %271 = sbr.rel (%p269) target = $region36
        $region35: #{tpu_custom_call.1} parent=23 // pred_region
          %s272 = sand.u32 %s21, 1
          %s273 = scalar_lea.sflag [#allocation10], %s272
          %s274 = sand.u32 %s137, 1
          %s275 = smul.addr %s274, 3
          %s276 = scalar_lea.vmem [#allocation11], %s275
          %s277 = smul.u32 3, %s29
          %279 = vsyncadd %s273, 0
          %s280 = scalar_lea.hbm %s4, %s277
          %s282 = sshll.u32 %s280, 4
          %s283 = int_to_ptr.hbm [resolvable:$true] %s282
          %s284 = sshll.u32 %s276, 4
          %s285 = int_to_ptr.vmem [resolvable:$true] %s284
          %287 = dma.hbm_to_vmem [thread:$0]  %s283, 48, %s285, %s273
        $region36: #{tpu_custom_call.1} parent=23 // pred_fallthru
          _
      $region24: #{tpu_custom_call.1} parent=5 // pred_fallthru
        _
      %p288 = scmp.le.s32.totalorder 1, %s21
      %p289 = scmp.lt.s32.totalorder %s21, 5
      %p290 = pnand %p288, %p289
      %p291 = pneg %p290
      // Predicated region
      $region37: #{tpu_custom_call.1} parent=5 // pred_check
        _
      $region38: #{tpu_custom_call.1} parent=5 // pred_check_branch
        %293 = sbr.rel (%p290) target = $region40
      $region39: #{tpu_custom_call.1} parent=5 // pred_region
        %s294 = ssub.s32 %s21, 1
        %s295 = sand.u32 %s46, 1
        %s296 = scalar_lea.sflag [#allocation4], %s295
        %s297 = sand.u32 %s46, 1
        %s298 = smul.addr %s297, 512
        %s299 = scalar_lea.vmem [#allocation3], %s298
        // Predicated region
        $region41: #{tpu_custom_call.1} parent=39 // pred_check
          %p300 = pneg %p59
        $region42: #{tpu_custom_call.1} parent=39 // pred_check_branch
          %302 = sbr.rel (%p300) target = $region44
        $region43: #{tpu_custom_call.1} parent=39 // pred_region
          %304 = dma.done %s296, 8192
        $region44: #{tpu_custom_call.1} parent=39 // pred_fallthru
          _
        // Predicated region
        $region45: #{tpu_custom_call.1} parent=39 // pred_check
          %p305 = pneg %p80
        $region46: #{tpu_custom_call.1} parent=39 // pred_check_branch
          %307 = sbr.rel (%p305) target = $region48
        $region47: #{tpu_custom_call.1} parent=39 // pred_region
          %309 = dma.done [#allocation7], 32
        $region48: #{tpu_custom_call.1} parent=39 // pred_fallthru
          _
        // Predicated region
        $region49: #{tpu_custom_call.1} parent=39 // pred_check
          %p310 = pneg %p101
        $region50: #{tpu_custom_call.1} parent=39 // pred_check_branch
          %312 = sbr.rel (%p310) target = $region52
        $region51: #{tpu_custom_call.1} parent=39 // pred_region
          %314 = dma.done [#allocation7], 32
        $region52: #{tpu_custom_call.1} parent=39 // pred_fallthru
          _
        %s315 = sand.u32 %s26, 1
        %s316 = scalar_lea.sflag [#allocation10], %s315
        %s317 = sand.u32 %s114, 1
        %s318 = smul.addr %s317, 384
        %s319 = scalar_lea.vmem [#allocation9], %s318
        // Predicated region
        $region53: #{tpu_custom_call.1} parent=39 // pred_check
          %p320 = pneg %p127
        $region54: #{tpu_custom_call.1} parent=39 // pred_check_branch
          %322 = sbr.rel (%p320) target = $region56
        $region55: #{tpu_custom_call.1} parent=39 // pred_region
          %324 = dma.done %s316, 6144
        $region56: #{tpu_custom_call.1} parent=39 // pred_fallthru
          _
        %s325 = sand.u32 %s26, 1
        %s326 = scalar_lea.sflag [#allocation10], %s325
        %s327 = sand.u32 %s140, 1
        %s328 = smul.addr %s327, 3
        %s329 = scalar_lea.vmem [#allocation11], %s328
        // Predicated region
        $region57: #{tpu_custom_call.1} parent=39 // pred_check
          %p330 = pneg %p153
        $region58: #{tpu_custom_call.1} parent=39 // pred_check_branch
          %332 = sbr.rel (%p330) target = $region60
        $region59: #{tpu_custom_call.1} parent=39 // pred_region
          %334 = dma.done %s326, 48
        $region60: #{tpu_custom_call.1} parent=39 // pred_fallthru
          _
        %s335 = sand.u32 %s46, 1
        %s336 = scalar_lea.sflag [#allocation4], %s335
        %s337 = sand.u32 %s46, 1
        %s338 = smul.addr %s337, 512
        %s339 = scalar_lea.vmem [#allocation3], %s338
        %p340 = pneg %p59
        %p341 = pneg %p56
        %p342 = pneg %p80
        %p343 = pneg %p77
        %p344 = pneg %p101
        %p345 = pneg %p98
        %s346 = sand.u32 %s26, 1
        %s347 = scalar_lea.sflag [#allocation10], %s346
        %s348 = sand.u32 %s114, 1
        %s349 = smul.addr %s348, 384
        %s350 = scalar_lea.vmem [#allocation9], %s349
        %p351 = pneg %p127
        %p352 = pneg %p124
        %s353 = sand.u32 %s26, 1
        %s354 = scalar_lea.sflag [#allocation10], %s353
        %s355 = sand.u32 %s140, 1
        %s356 = smul.addr %s355, 3
        %s357 = scalar_lea.vmem [#allocation11], %s356
        %p358 = pneg %p153
        %p359 = pneg %p150
        %p360 = pneg %p181
        %p361 = pneg %p178
        %s362 = sand.u32 %s168, 1
        %s363 = scalar_lea.sflag [#allocation5], %s362
        %s364 = sand.u32 %s168, 1
        %s365 = smul.addr %s364, 384
        %s366 = scalar_lea.vmem [#allocation12], %s365
        %s367 = smul.u32 32, %s30
        %s368 = smul.u32 3, %s31
        %s369 = smul.u32 3, %s31
        %s370 = smul.u32 32, %s30
        %s371 = smul.u32 3, %s31
        %p372 = scmp.eq.s32.totalorder %s31, 0
        // Predicated region
        $region61: #{tpu_custom_call.1} parent=39 // pred_check
          %p373 = pneg %p372
        $region62: #{tpu_custom_call.1} parent=39 // pred_check_branch
          %375 = sbr.rel (%p373) target = $region64
        $region63: #{tpu_custom_call.1} parent=39 // pred_region
          %v376 = vld [vmem:[%s299] sm:$0xff]
          %v377 = vld [vmem:[%s299 + $0x8] sm:$0xff]
          %v378 = vld [vmem:[%s299 + $0x10] sm:$0xff]
          %v379 = vld [vmem:[%s299 + $0x18] sm:$0xff]
          %v380 = vld [vmem:[%s299 + $0x20] sm:$0xff]
          %v381 = vld [vmem:[%s299 + $0x28] sm:$0xff]
          %v382 = vld [vmem:[%s299 + $0x30] sm:$0xff]
          %v383 = vld [vmem:[%s299 + $0x38] sm:$0xff]
          %v384 = vld [vmem:[%s299 + $0x40] sm:$0xff]
          %v385 = vld [vmem:[%s299 + $0x48] sm:$0xff]
          %v386 = vld [vmem:[%s299 + $0x50] sm:$0xff]
          %v387 = vld [vmem:[%s299 + $0x58] sm:$0xff]
          %v388 = vld [vmem:[%s299 + $0x60] sm:$0xff]
          %v389 = vld [vmem:[%s299 + $0x68] sm:$0xff]
          %v390 = vld [vmem:[%s299 + $0x70] sm:$0xff]
          %v391 = vld [vmem:[%s299 + $0x78] sm:$0xff]
          %v392 = vld [vmem:[%s299 + $0x80] sm:$0xff]
          %v393 = vld [vmem:[%s299 + $0x88] sm:$0xff]
          %v394 = vld [vmem:[%s299 + $0x90] sm:$0xff]
          %v395 = vld [vmem:[%s299 + $0x98] sm:$0xff]
          %v396 = vld [vmem:[%s299 + $0xa0] sm:$0xff]
          %v397 = vld [vmem:[%s299 + $0xa8] sm:$0xff]
          %v398 = vld [vmem:[%s299 + $0xb0] sm:$0xff]
          %v399 = vld [vmem:[%s299 + $0xb8] sm:$0xff]
          %v400 = vld [vmem:[%s299 + $0xc0] sm:$0xff]
          %v401 = vld [vmem:[%s299 + $0xc8] sm:$0xff]
          %v402 = vld [vmem:[%s299 + $0xd0] sm:$0xff]
          %v403 = vld [vmem:[%s299 + $0xd8] sm:$0xff]
          %v404 = vld [vmem:[%s299 + $0xe0] sm:$0xff]
          %v405 = vld [vmem:[%s299 + $0xe8] sm:$0xff]
          %v406 = vld [vmem:[%s299 + $0xf0] sm:$0xff]
          %v407 = vld [vmem:[%s299 + $0xf8] sm:$0xff]
          %v408 = vld [vmem:[%s299 + $0x100] sm:$0xff]
          %v409 = vld [vmem:[%s299 + $0x108] sm:$0xff]
          %v410 = vld [vmem:[%s299 + $0x110] sm:$0xff]
          %v411 = vld [vmem:[%s299 + $0x118] sm:$0xff]
          %v412 = vld [vmem:[%s299 + $0x120] sm:$0xff]
          %v413 = vld [vmem:[%s299 + $0x128] sm:$0xff]
          %v414 = vld [vmem:[%s299 + $0x130] sm:$0xff]
          %v415 = vld [vmem:[%s299 + $0x138] sm:$0xff]
          %v416 = vld [vmem:[%s299 + $0x140] sm:$0xff]
          %v417 = vld [vmem:[%s299 + $0x148] sm:$0xff]
          %v418 = vld [vmem:[%s299 + $0x150] sm:$0xff]
          %v419 = vld [vmem:[%s299 + $0x158] sm:$0xff]
          %v420 = vld [vmem:[%s299 + $0x160] sm:$0xff]
          %v421 = vld [vmem:[%s299 + $0x168] sm:$0xff]
          %v422 = vld [vmem:[%s299 + $0x170] sm:$0xff]
          %v423 = vld [vmem:[%s299 + $0x178] sm:$0xff]
          %v424 = vld [vmem:[%s299 + $0x180] sm:$0xff]
          %v425 = vld [vmem:[%s299 + $0x188] sm:$0xff]
          %v426 = vld [vmem:[%s299 + $0x190] sm:$0xff]
          %v427 = vld [vmem:[%s299 + $0x198] sm:$0xff]
          %v428 = vld [vmem:[%s299 + $0x1a0] sm:$0xff]
          %v429 = vld [vmem:[%s299 + $0x1a8] sm:$0xff]
          %v430 = vld [vmem:[%s299 + $0x1b0] sm:$0xff]
          %v431 = vld [vmem:[%s299 + $0x1b8] sm:$0xff]
          %v432 = vld [vmem:[%s299 + $0x1c0] sm:$0xff]
          %v433 = vld [vmem:[%s299 + $0x1c8] sm:$0xff]
          %v434 = vld [vmem:[%s299 + $0x1d0] sm:$0xff]
          %v435 = vld [vmem:[%s299 + $0x1d8] sm:$0xff]
          %v436 = vld [vmem:[%s299 + $0x1e0] sm:$0xff]
          %v437 = vld [vmem:[%s299 + $0x1e8] sm:$0xff]
          %v438 = vld [vmem:[%s299 + $0x1f0] sm:$0xff]
          %v439 = vld [vmem:[%s299 + $0x1f8] sm:$0xff]
          %v440 = vld [vmem:[#allocation6] sm:$0x3]
          %v441 = vld [vmem:[#allocation8] sm:$0x3]
          %v442 = vadd.f32 %v376, %v377
          %443 = vadd.xlane.f32.xlu0 %v442
          %v444 = vpop.xlane.xlu0 %443
          %v445 = vadd.f32 %v378, %v379
          %446 = vadd.xlane.f32.xlu0 %v445
          %v447 = vpop.xlane.xlu0 %446
          %v448 = vadd.f32 %v380, %v381
          %449 = vadd.xlane.f32.xlu0 %v448
          %v450 = vpop.xlane.xlu0 %449
          %v451 = vadd.f32 %v382, %v383
          %452 = vadd.xlane.f32.xlu0 %v451
          %v453 = vpop.xlane.xlu0 %452
          %v454 = vadd.f32 %v384, %v385
          %455 = vadd.xlane.f32.xlu0 %v454
          %v456 = vpop.xlane.xlu0 %455
          %v457 = vadd.f32 %v386, %v387
          %458 = vadd.xlane.f32.xlu0 %v457
          %v459 = vpop.xlane.xlu0 %458
          %v460 = vadd.f32 %v388, %v389
          %461 = vadd.xlane.f32.xlu0 %v460
          %v462 = vpop.xlane.xlu0 %461
          %v463 = vadd.f32 %v390, %v391
          %464 = vadd.xlane.f32.xlu0 %v463
          %v465 = vpop.xlane.xlu0 %464
          %v466 = vadd.f32 %v392, %v393
          %467 = vadd.xlane.f32.xlu0 %v466
          %v468 = vpop.xlane.xlu0 %467
          %v469 = vadd.f32 %v394, %v395
          %470 = vadd.xlane.f32.xlu0 %v469
          %v471 = vpop.xlane.xlu0 %470
          %v472 = vadd.f32 %v396, %v397
          %473 = vadd.xlane.f32.xlu0 %v472
          %v474 = vpop.xlane.xlu0 %473
          %v475 = vadd.f32 %v398, %v399
          %476 = vadd.xlane.f32.xlu0 %v475
          %v477 = vpop.xlane.xlu0 %476
          %v478 = vadd.f32 %v400, %v401
          %479 = vadd.xlane.f32.xlu0 %v478
          %v480 = vpop.xlane.xlu0 %479
          %v481 = vadd.f32 %v402, %v403
          %482 = vadd.xlane.f32.xlu0 %v481
          %v483 = vpop.xlane.xlu0 %482
          %v484 = vadd.f32 %v404, %v405
          %485 = vadd.xlane.f32.xlu0 %v484
          %v486 = vpop.xlane.xlu0 %485
          %v487 = vadd.f32 %v406, %v407
          %488 = vadd.xlane.f32.xlu0 %v487
          %v489 = vpop.xlane.xlu0 %488
          %v490 = vadd.f32 %v408, %v409
          %491 = vadd.xlane.f32.xlu0 %v490
          %v492 = vpop.xlane.xlu0 %491
          %v493 = vadd.f32 %v410, %v411
          %494 = vadd.xlane.f32.xlu0 %v493
          %v495 = vpop.xlane.xlu0 %494
          %v496 = vadd.f32 %v412, %v413
          %497 = vadd.xlane.f32.xlu0 %v496
          %v498 = vpop.xlane.xlu0 %497
          %v499 = vadd.f32 %v414, %v415
          %500 = vadd.xlane.f32.xlu0 %v499
          %v501 = vpop.xlane.xlu0 %500
          %v502 = vadd.f32 %v416, %v417
          %503 = vadd.xlane.f32.xlu0 %v502
          %v504 = vpop.xlane.xlu0 %503
          %v505 = vadd.f32 %v418, %v419
          %506 = vadd.xlane.f32.xlu0 %v505
          %v507 = vpop.xlane.xlu0 %506
          %v508 = vadd.f32 %v420, %v421
          %509 = vadd.xlane.f32.xlu0 %v508
          %v510 = vpop.xlane.xlu0 %509
          %v511 = vadd.f32 %v422, %v423
          %512 = vadd.xlane.f32.xlu0 %v511
          %v513 = vpop.xlane.xlu0 %512
          %v514 = vadd.f32 %v424, %v425
          %515 = vadd.xlane.f32.xlu0 %v514
          %v516 = vpop.xlane.xlu0 %515
          %v517 = vadd.f32 %v426, %v427
          %518 = vadd.xlane.f32.xlu0 %v517
          %v519 = vpop.xlane.xlu0 %518
          %v520 = vadd.f32 %v428, %v429
          %521 = vadd.xlane.f32.xlu0 %v520
          %v522 = vpop.xlane.xlu0 %521
          %v523 = vadd.f32 %v430, %v431
          %524 = vadd.xlane.f32.xlu0 %v523
          %v525 = vpop.xlane.xlu0 %524
          %v526 = vadd.f32 %v432, %v433
          %527 = vadd.xlane.f32.xlu0 %v526
          %v528 = vpop.xlane.xlu0 %527
          %v529 = vadd.f32 %v434, %v435
          %530 = vadd.xlane.f32.xlu0 %v529
          %v531 = vpop.xlane.xlu0 %530
          %v532 = vadd.f32 %v436, %v437
          %533 = vadd.xlane.f32.xlu0 %v532
          %v534 = vpop.xlane.xlu0 %533
          %v535 = vadd.f32 %v438, %v439
          %536 = vadd.xlane.f32.xlu0 %v535
          %v537 = vpop.xlane.xlu0 %536
          %v538 = vrcp.pop 256.0
          %v539 = vmul.f32 256.0, %v538
          %v540 = vsub.f32 1.0, %v539
          %v541 = vmul.f32 %v538, %v540
          %v542 = vadd.f32 %v538, %v541
          %vm543 = vweird.f32 %v538
          %v544 = vsel %vm543, %v538, %v542
          %v545 = vmul.f32 %v444, %v544
          %v546 = vmul.f32 %v447, %v544
          %v547 = vmul.f32 %v450, %v544
          %v548 = vmul.f32 %v453, %v544
          %v549 = vmul.f32 %v456, %v544
          %v550 = vmul.f32 %v459, %v544
          %v551 = vmul.f32 %v462, %v544
          %v552 = vmul.f32 %v465, %v544
          %v553 = vmul.f32 %v468, %v544
          %v554 = vmul.f32 %v471, %v544
          %v555 = vmul.f32 %v474, %v544
          %v556 = vmul.f32 %v477, %v544
          %v557 = vmul.f32 %v480, %v544
          %v558 = vmul.f32 %v483, %v544
          %v559 = vmul.f32 %v486, %v544
          %v560 = vmul.f32 %v489, %v544
          %v561 = vmul.f32 %v492, %v544
          %v562 = vmul.f32 %v495, %v544
          %v563 = vmul.f32 %v498, %v544
          %v564 = vmul.f32 %v501, %v544
          %v565 = vmul.f32 %v504, %v544
          %v566 = vmul.f32 %v507, %v544
          %v567 = vmul.f32 %v510, %v544
          %v568 = vmul.f32 %v513, %v544
          %v569 = vmul.f32 %v516, %v544
          %v570 = vmul.f32 %v519, %v544
          %v571 = vmul.f32 %v522, %v544
          %v572 = vmul.f32 %v525, %v544
          %v573 = vmul.f32 %v528, %v544
          %v574 = vmul.f32 %v531, %v544
          %v575 = vmul.f32 %v534, %v544
          %v576 = vmul.f32 %v537, %v544
          %v577 = vsub.f32 %v376, %v545
          %v578 = vsub.f32 %v377, %v545
          %v579 = vsub.f32 %v378, %v546
          %v580 = vsub.f32 %v379, %v546
          %v581 = vsub.f32 %v380, %v547
          %v582 = vsub.f32 %v381, %v547
          %v583 = vsub.f32 %v382, %v548
          %v584 = vsub.f32 %v383, %v548
          %v585 = vsub.f32 %v384, %v549
          %v586 = vsub.f32 %v385, %v549
          %v587 = vsub.f32 %v386, %v550
          %v588 = vsub.f32 %v387, %v550
          %v589 = vsub.f32 %v388, %v551
          %v590 = vsub.f32 %v389, %v551
          %v591 = vsub.f32 %v390, %v552
          %v592 = vsub.f32 %v391, %v552
          %v593 = vsub.f32 %v392, %v553
          %v594 = vsub.f32 %v393, %v553
          %v595 = vsub.f32 %v394, %v554
          %v596 = vsub.f32 %v395, %v554
          %v597 = vsub.f32 %v396, %v555
          %v598 = vsub.f32 %v397, %v555
          %v599 = vsub.f32 %v398, %v556
          %v600 = vsub.f32 %v399, %v556
          %v601 = vsub.f32 %v400, %v557
          %v602 = vsub.f32 %v401, %v557
          %v603 = vsub.f32 %v402, %v558
          %v604 = vsub.f32 %v403, %v558
          %v605 = vsub.f32 %v404, %v559
          %v606 = vsub.f32 %v405, %v559
          %v607 = vsub.f32 %v406, %v560
          %v608 = vsub.f32 %v407, %v560
          %v609 = vsub.f32 %v408, %v561
          %v610 = vsub.f32 %v409, %v561
          %v611 = vsub.f32 %v410, %v562
          %v612 = vsub.f32 %v411, %v562
          %v613 = vsub.f32 %v412, %v563
          %v614 = vsub.f32 %v413, %v563
          %v615 = vsub.f32 %v414, %v564
          %v616 = vsub.f32 %v415, %v564
          %v617 = vsub.f32 %v416, %v565
          %v618 = vsub.f32 %v417, %v565
          %v619 = vsub.f32 %v418, %v566
          %v620 = vsub.f32 %v419, %v566
          %v621 = vsub.f32 %v420, %v567
          %v622 = vsub.f32 %v421, %v567
          %v623 = vsub.f32 %v422, %v568
          %v624 = vsub.f32 %v423, %v568
          %v625 = vsub.f32 %v424, %v569
          %v626 = vsub.f32 %v425, %v569
          %v627 = vsub.f32 %v426, %v570
          %v628 = vsub.f32 %v427, %v570
          %v629 = vsub.f32 %v428, %v571
          %v630 = vsub.f32 %v429, %v571
          %v631 = vsub.f32 %v430, %v572
          %v632 = vsub.f32 %v431, %v572
          %v633 = vsub.f32 %v432, %v573
          %v634 = vsub.f32 %v433, %v573
          %v635 = vsub.f32 %v434, %v574
          %v636 = vsub.f32 %v435, %v574
          %v637 = vsub.f32 %v436, %v575
          %v638 = vsub.f32 %v437, %v575
          %v639 = vsub.f32 %v438, %v576
          %v640 = vsub.f32 %v439, %v576
          %v641 = vmul.f32 %v577, %v577
          %v642 = vmul.f32 %v578, %v578
          %v643 = vmul.f32 %v579, %v579
          %v644 = vmul.f32 %v580, %v580
          %v645 = vmul.f32 %v581, %v581
          %v646 = vmul.f32 %v582, %v582
          %v647 = vmul.f32 %v583, %v583
          %v648 = vmul.f32 %v584, %v584
          %v649 = vmul.f32 %v585, %v585
          %v650 = vmul.f32 %v586, %v586
          %v651 = vmul.f32 %v587, %v587
          %v652 = vmul.f32 %v588, %v588
          %v653 = vmul.f32 %v589, %v589
          %v654 = vmul.f32 %v590, %v590
          %v655 = vmul.f32 %v591, %v591
          %v656 = vmul.f32 %v592, %v592
          %v657 = vmul.f32 %v593, %v593
          %v658 = vmul.f32 %v594, %v594
          %v659 = vmul.f32 %v595, %v595
          %v660 = vmul.f32 %v596, %v596
          %v661 = vmul.f32 %v597, %v597
          %v662 = vmul.f32 %v598, %v598
          %v663 = vmul.f32 %v599, %v599
          %v664 = vmul.f32 %v600, %v600
          %v665 = vmul.f32 %v601, %v601
          %v666 = vmul.f32 %v602, %v602
          %v667 = vmul.f32 %v603, %v603
          %v668 = vmul.f32 %v604, %v604
          %v669 = vmul.f32 %v605, %v605
          %v670 = vmul.f32 %v606, %v606
          %v671 = vmul.f32 %v607, %v607
          %v672 = vmul.f32 %v608, %v608
          %v673 = vmul.f32 %v609, %v609
          %v674 = vmul.f32 %v610, %v610
          %v675 = vmul.f32 %v611, %v611
          %v676 = vmul.f32 %v612, %v612
          %v677 = vmul.f32 %v613, %v613
          %v678 = vmul.f32 %v614, %v614
          %v679 = vmul.f32 %v615, %v615
          %v680 = vmul.f32 %v616, %v616
          %v681 = vmul.f32 %v617, %v617
          %v682 = vmul.f32 %v618, %v618
          %v683 = vmul.f32 %v619, %v619
          %v684 = vmul.f32 %v620, %v620
          %v685 = vmul.f32 %v621, %v621
          %v686 = vmul.f32 %v622, %v622
          %v687 = vmul.f32 %v623, %v623
          %v688 = vmul.f32 %v624, %v624
          %v689 = vmul.f32 %v625, %v625
          %v690 = vmul.f32 %v626, %v626
          %v691 = vmul.f32 %v627, %v627
          %v692 = vmul.f32 %v628, %v628
          %v693 = vmul.f32 %v629, %v629
          %v694 = vmul.f32 %v630, %v630
          %v695 = vmul.f32 %v631, %v631
          %v696 = vmul.f32 %v632, %v632
          %v697 = vmul.f32 %v633, %v633
          %v698 = vmul.f32 %v634, %v634
          %v699 = vmul.f32 %v635, %v635
          %v700 = vmul.f32 %v636, %v636
          %v701 = vmul.f32 %v637, %v637
          %v702 = vmul.f32 %v638, %v638
          %v703 = vmul.f32 %v639, %v639
          %v704 = vmul.f32 %v640, %v640
          %v705 = vadd.f32 %v641, %v642
          %706 = vadd.xlane.f32.xlu0 %v705
          %v707 = vpop.xlane.xlu0 %706
          %v708 = vadd.f32 %v643, %v644
          %709 = vadd.xlane.f32.xlu0 %v708
          %v710 = vpop.xlane.xlu0 %709
          %v711 = vadd.f32 %v645, %v646
          %712 = vadd.xlane.f32.xlu0 %v711
          %v713 = vpop.xlane.xlu0 %712
          %v714 = vadd.f32 %v647, %v648
          %715 = vadd.xlane.f32.xlu0 %v714
          %v716 = vpop.xlane.xlu0 %715
          %v717 = vadd.f32 %v649, %v650
          %718 = vadd.xlane.f32.xlu0 %v717
          %v719 = vpop.xlane.xlu0 %718
          %v720 = vadd.f32 %v651, %v652
          %721 = vadd.xlane.f32.xlu0 %v720
          %v722 = vpop.xlane.xlu0 %721
          %v723 = vadd.f32 %v653, %v654
          %724 = vadd.xlane.f32.xlu0 %v723
          %v725 = vpop.xlane.xlu0 %724
          %v726 = vadd.f32 %v655, %v656
          %727 = vadd.xlane.f32.xlu0 %v726
          %v728 = vpop.xlane.xlu0 %727
          %v729 = vadd.f32 %v657, %v658
          %730 = vadd.xlane.f32.xlu0 %v729
          %v731 = vpop.xlane.xlu0 %730
          %v732 = vadd.f32 %v659, %v660
          %733 = vadd.xlane.f32.xlu0 %v732
          %v734 = vpop.xlane.xlu0 %733
          %v735 = vadd.f32 %v661, %v662
          %736 = vadd.xlane.f32.xlu0 %v735
          %v737 = vpop.xlane.xlu0 %736
          %v738 = vadd.f32 %v663, %v664
          %739 = vadd.xlane.f32.xlu0 %v738
          %v740 = vpop.xlane.xlu0 %739
          %v741 = vadd.f32 %v665, %v666
          %742 = vadd.xlane.f32.xlu0 %v741
          %v743 = vpop.xlane.xlu0 %742
          %v744 = vadd.f32 %v667, %v668
          %745 = vadd.xlane.f32.xlu0 %v744
          %v746 = vpop.xlane.xlu0 %745
          %v747 = vadd.f32 %v669, %v670
          %748 = vadd.xlane.f32.xlu0 %v747
          %v749 = vpop.xlane.xlu0 %748
          %v750 = vadd.f32 %v671, %v672
          %751 = vadd.xlane.f32.xlu0 %v750
          %v752 = vpop.xlane.xlu0 %751
          %v753 = vadd.f32 %v673, %v674
          %754 = vadd.xlane.f32.xlu0 %v753
          %v755 = vpop.xlane.xlu0 %754
          %v756 = vadd.f32 %v675, %v676
          %757 = vadd.xlane.f32.xlu0 %v756
          %v758 = vpop.xlane.xlu0 %757
          %v759 = vadd.f32 %v677, %v678
          %760 = vadd.xlane.f32.xlu0 %v759
          %v761 = vpop.xlane.xlu0 %760
          %v762 = vadd.f32 %v679, %v680
          %763 = vadd.xlane.f32.xlu0 %v762
          %v764 = vpop.xlane.xlu0 %763
          %v765 = vadd.f32 %v681, %v682
          %766 = vadd.xlane.f32.xlu0 %v765
          %v767 = vpop.xlane.xlu0 %766
          %v768 = vadd.f32 %v683, %v684
          %769 = vadd.xlane.f32.xlu0 %v768
          %v770 = vpop.xlane.xlu0 %769
          %v771 = vadd.f32 %v685, %v686
          %772 = vadd.xlane.f32.xlu0 %v771
          %v773 = vpop.xlane.xlu0 %772
          %v774 = vadd.f32 %v687, %v688
          %775 = vadd.xlane.f32.xlu0 %v774
          %v776 = vpop.xlane.xlu0 %775
          %v777 = vadd.f32 %v689, %v690
          %778 = vadd.xlane.f32.xlu0 %v777
          %v779 = vpop.xlane.xlu0 %778
          %v780 = vadd.f32 %v691, %v692
          %781 = vadd.xlane.f32.xlu0 %v780
          %v782 = vpop.xlane.xlu0 %781
          %v783 = vadd.f32 %v693, %v694
          %784 = vadd.xlane.f32.xlu0 %v783
          %v785 = vpop.xlane.xlu0 %784
          %v786 = vadd.f32 %v695, %v696
          %787 = vadd.xlane.f32.xlu0 %v786
          %v788 = vpop.xlane.xlu0 %787
          %v789 = vadd.f32 %v697, %v698
          %790 = vadd.xlane.f32.xlu0 %v789
          %v791 = vpop.xlane.xlu0 %790
          %v792 = vadd.f32 %v699, %v700
          %793 = vadd.xlane.f32.xlu0 %v792
          %v794 = vpop.xlane.xlu0 %793
          %v795 = vadd.f32 %v701, %v702
          %796 = vadd.xlane.f32.xlu0 %v795
          %v797 = vpop.xlane.xlu0 %796
          %v798 = vadd.f32 %v703, %v704
          %799 = vadd.xlane.f32.xlu0 %v798
          %v800 = vpop.xlane.xlu0 %799
          %v801 = vmul.f32 %v707, %v544
          %v802 = vmul.f32 %v710, %v544
          %v803 = vmul.f32 %v713, %v544
          %v804 = vmul.f32 %v716, %v544
          %v805 = vmul.f32 %v719, %v544
          %v806 = vmul.f32 %v722, %v544
          %v807 = vmul.f32 %v725, %v544
          %v808 = vmul.f32 %v728, %v544
          %v809 = vmul.f32 %v731, %v544
          %v810 = vmul.f32 %v734, %v544
          %v811 = vmul.f32 %v737, %v544
          %v812 = vmul.f32 %v740, %v544
          %v813 = vmul.f32 %v743, %v544
          %v814 = vmul.f32 %v746, %v544
          %v815 = vmul.f32 %v749, %v544
          %v816 = vmul.f32 %v752, %v544
          %v817 = vmul.f32 %v755, %v544
          %v818 = vmul.f32 %v758, %v544
          %v819 = vmul.f32 %v761, %v544
          %v820 = vmul.f32 %v764, %v544
          %v821 = vmul.f32 %v767, %v544
          %v822 = vmul.f32 %v770, %v544
          %v823 = vmul.f32 %v773, %v544
          %v824 = vmul.f32 %v776, %v544
          %v825 = vmul.f32 %v779, %v544
          %v826 = vmul.f32 %v782, %v544
          %v827 = vmul.f32 %v785, %v544
          %v828 = vmul.f32 %v788, %v544
          %v829 = vmul.f32 %v791, %v544
          %v830 = vmul.f32 %v794, %v544
          %v831 = vmul.f32 %v797, %v544
          %v832 = vmul.f32 %v800, %v544
          %v833 = vadd.f32 %v801, 1e-05
          %v834 = vadd.f32 %v802, 1e-05
          %v835 = vadd.f32 %v803, 1e-05
          %v836 = vadd.f32 %v804, 1e-05
          %v837 = vadd.f32 %v805, 1e-05
          %v838 = vadd.f32 %v806, 1e-05
          %v839 = vadd.f32 %v807, 1e-05
          %v840 = vadd.f32 %v808, 1e-05
          %v841 = vadd.f32 %v809, 1e-05
          %v842 = vadd.f32 %v810, 1e-05
          %v843 = vadd.f32 %v811, 1e-05
          %v844 = vadd.f32 %v812, 1e-05
          %v845 = vadd.f32 %v813, 1e-05
          %v846 = vadd.f32 %v814, 1e-05
          %v847 = vadd.f32 %v815, 1e-05
          %v848 = vadd.f32 %v816, 1e-05
          %v849 = vadd.f32 %v817, 1e-05
          %v850 = vadd.f32 %v818, 1e-05
          %v851 = vadd.f32 %v819, 1e-05
          %v852 = vadd.f32 %v820, 1e-05
          %v853 = vadd.f32 %v821, 1e-05
          %v854 = vadd.f32 %v822, 1e-05
          %v855 = vadd.f32 %v823, 1e-05
          %v856 = vadd.f32 %v824, 1e-05
          %v857 = vadd.f32 %v825, 1e-05
          %v858 = vadd.f32 %v826, 1e-05
          %v859 = vadd.f32 %v827, 1e-05
          %v860 = vadd.f32 %v828, 1e-05
          %v861 = vadd.f32 %v829, 1e-05
          %v862 = vadd.f32 %v830, 1e-05
          %v863 = vadd.f32 %v831, 1e-05
          %v864 = vadd.f32 %v832, 1e-05
          %v865 = vrsqrt.pop %v833
          %v866 = vmul.f32 %v865, %v833
          %v867 = vmul.f32 %v866, %v865
          %v868 = vmul.f32 0.5, %v867
          %v869 = vsub.f32 1.5, %v868
          %v870 = vmul.f32 %v865, %v869
          %vm871 = vweird.f32 %v833
          %vm872 = vweird.f32 %v865
          %vm873 = vmor %vm871, %vm872
          %v874 = vsel %vm873, %v865, %v870
          %v875 = vrsqrt.pop %v834
          %v876 = vmul.f32 %v875, %v834
          %v877 = vmul.f32 %v876, %v875
          %v878 = vmul.f32 0.5, %v877
          %v879 = vsub.f32 1.5, %v878
          %v880 = vmul.f32 %v875, %v879
          %vm881 = vweird.f32 %v834
          %vm882 = vweird.f32 %v875
          %vm883 = vmor %vm881, %vm882
          %v884 = vsel %vm883, %v875, %v880
          %v885 = vrsqrt.pop %v835
          %v886 = vmul.f32 %v885, %v835
          %v887 = vmul.f32 %v886, %v885
          %v888 = vmul.f32 0.5, %v887
          %v889 = vsub.f32 1.5, %v888
          %v890 = vmul.f32 %v885, %v889
          %vm891 = vweird.f32 %v835
          %vm892 = vweird.f32 %v885
          %vm893 = vmor %vm891, %vm892
          %v894 = vsel %vm893, %v885, %v890
          %v895 = vrsqrt.pop %v836
          %v896 = vmul.f32 %v895, %v836
          %v897 = vmul.f32 %v896, %v895
          %v898 = vmul.f32 0.5, %v897
          %v899 = vsub.f32 1.5, %v898
          %v900 = vmul.f32 %v895, %v899
          %vm901 = vweird.f32 %v836
          %vm902 = vweird.f32 %v895
          %vm903 = vmor %vm901, %vm902
          %v904 = vsel %vm903, %v895, %v900
          %v905 = vrsqrt.pop %v837
          %v906 = vmul.f32 %v905, %v837
          %v907 = vmul.f32 %v906, %v905
          %v908 = vmul.f32 0.5, %v907
          %v909 = vsub.f32 1.5, %v908
          %v910 = vmul.f32 %v905, %v909
          %vm911 = vweird.f32 %v837
          %vm912 = vweird.f32 %v905
          %vm913 = vmor %vm911, %vm912
          %v914 = vsel %vm913, %v905, %v910
          %v915 = vrsqrt.pop %v838
          %v916 = vmul.f32 %v915, %v838
          %v917 = vmul.f32 %v916, %v915
          %v918 = vmul.f32 0.5, %v917
          %v919 = vsub.f32 1.5, %v918
          %v920 = vmul.f32 %v915, %v919
          %vm921 = vweird.f32 %v838
          %vm922 = vweird.f32 %v915
          %vm923 = vmor %vm921, %vm922
          %v924 = vsel %vm923, %v915, %v920
          %v925 = vrsqrt.pop %v839
          %v926 = vmul.f32 %v925, %v839
          %v927 = vmul.f32 %v926, %v925
          %v928 = vmul.f32 0.5, %v927
          %v929 = vsub.f32 1.5, %v928
          %v930 = vmul.f32 %v925, %v929
          %vm931 = vweird.f32 %v839
          %vm932 = vweird.f32 %v925
          %vm933 = vmor %vm931, %vm932
          %v934 = vsel %vm933, %v925, %v930
          %v935 = vrsqrt.pop %v840
          %v936 = vmul.f32 %v935, %v840
          %v937 = vmul.f32 %v936, %v935
          %v938 = vmul.f32 0.5, %v937
          %v939 = vsub.f32 1.5, %v938
          %v940 = vmul.f32 %v935, %v939
          %vm941 = vweird.f32 %v840
          %vm942 = vweird.f32 %v935
          %vm943 = vmor %vm941, %vm942
          %v944 = vsel %vm943, %v935, %v940
          %v945 = vrsqrt.pop %v841
          %v946 = vmul.f32 %v945, %v841
          %v947 = vmul.f32 %v946, %v945
          %v948 = vmul.f32 0.5, %v947
          %v949 = vsub.f32 1.5, %v948
          %v950 = vmul.f32 %v945, %v949
          %vm951 = vweird.f32 %v841
          %vm952 = vweird.f32 %v945
          %vm953 = vmor %vm951, %vm952
          %v954 = vsel %vm953, %v945, %v950
          %v955 = vrsqrt.pop %v842
          %v956 = vmul.f32 %v955, %v842
          %v957 = vmul.f32 %v956, %v955
          %v958 = vmul.f32 0.5, %v957
          %v959 = vsub.f32 1.5, %v958
          %v960 = vmul.f32 %v955, %v959
          %vm961 = vweird.f32 %v842
          %vm962 = vweird.f32 %v955
          %vm963 = vmor %vm961, %vm962
          %v964 = vsel %vm963, %v955, %v960
          %v965 = vrsqrt.pop %v843
          %v966 = vmul.f32 %v965, %v843
          %v967 = vmul.f32 %v966, %v965
          %v968 = vmul.f32 0.5, %v967
          %v969 = vsub.f32 1.5, %v968
          %v970 = vmul.f32 %v965, %v969
          %vm971 = vweird.f32 %v843
          %vm972 = vweird.f32 %v965
          %vm973 = vmor %vm971, %vm972
          %v974 = vsel %vm973, %v965, %v970
          %v975 = vrsqrt.pop %v844
          %v976 = vmul.f32 %v975, %v844
          %v977 = vmul.f32 %v976, %v975
          %v978 = vmul.f32 0.5, %v977
          %v979 = vsub.f32 1.5, %v978
          %v980 = vmul.f32 %v975, %v979
          %vm981 = vweird.f32 %v844
          %vm982 = vweird.f32 %v975
          %vm983 = vmor %vm981, %vm982
          %v984 = vsel %vm983, %v975, %v980
          %v985 = vrsqrt.pop %v845
          %v986 = vmul.f32 %v985, %v845
          %v987 = vmul.f32 %v986, %v985
          %v988 = vmul.f32 0.5, %v987
          %v989 = vsub.f32 1.5, %v988
          %v990 = vmul.f32 %v985, %v989
          %vm991 = vweird.f32 %v845
          %vm992 = vweird.f32 %v985
          %vm993 = vmor %vm991, %vm992
          %v994 = vsel %vm993, %v985, %v990
          %v995 = vrsqrt.pop %v846
          %v996 = vmul.f32 %v995, %v846
          %v997 = vmul.f32 %v996, %v995
          %v998 = vmul.f32 0.5, %v997
          %v999 = vsub.f32 1.5, %v998
          %v1000 = vmul.f32 %v995, %v999
          %vm1001 = vweird.f32 %v846
          %vm1002 = vweird.f32 %v995
          %vm1003 = vmor %vm1001, %vm1002
          %v1004 = vsel %vm1003, %v995, %v1000
          %v1005 = vrsqrt.pop %v847
          %v1006 = vmul.f32 %v1005, %v847
          %v1007 = vmul.f32 %v1006, %v1005
          %v1008 = vmul.f32 0.5, %v1007
          %v1009 = vsub.f32 1.5, %v1008
          %v1010 = vmul.f32 %v1005, %v1009
          %vm1011 = vweird.f32 %v847
          %vm1012 = vweird.f32 %v1005
          %vm1013 = vmor %vm1011, %vm1012
          %v1014 = vsel %vm1013, %v1005, %v1010
          %v1015 = vrsqrt.pop %v848
          %v1016 = vmul.f32 %v1015, %v848
          %v1017 = vmul.f32 %v1016, %v1015
          %v1018 = vmul.f32 0.5, %v1017
          %v1019 = vsub.f32 1.5, %v1018
          %v1020 = vmul.f32 %v1015, %v1019
          %vm1021 = vweird.f32 %v848
          %vm1022 = vweird.f32 %v1015
          %vm1023 = vmor %vm1021, %vm1022
          %v1024 = vsel %vm1023, %v1015, %v1020
          %v1025 = vrsqrt.pop %v849
          %v1026 = vmul.f32 %v1025, %v849
          %v1027 = vmul.f32 %v1026, %v1025
          %v1028 = vmul.f32 0.5, %v1027
          %v1029 = vsub.f32 1.5, %v1028
          %v1030 = vmul.f32 %v1025, %v1029
          %vm1031 = vweird.f32 %v849
          %vm1032 = vweird.f32 %v1025
          %vm1033 = vmor %vm1031, %vm1032
          %v1034 = vsel %vm1033, %v1025, %v1030
          %v1035 = vrsqrt.pop %v850
          %v1036 = vmul.f32 %v1035, %v850
          %v1037 = vmul.f32 %v1036, %v1035
          %v1038 = vmul.f32 0.5, %v1037
          %v1039 = vsub.f32 1.5, %v1038
          %v1040 = vmul.f32 %v1035, %v1039
          %vm1041 = vweird.f32 %v850
          %vm1042 = vweird.f32 %v1035
          %vm1043 = vmor %vm1041, %vm1042
          %v1044 = vsel %vm1043, %v1035, %v1040
          %v1045 = vrsqrt.pop %v851
          %v1046 = vmul.f32 %v1045, %v851
          %v1047 = vmul.f32 %v1046, %v1045
          %v1048 = vmul.f32 0.5, %v1047
          %v1049 = vsub.f32 1.5, %v1048
          %v1050 = vmul.f32 %v1045, %v1049
          %vm1051 = vweird.f32 %v851
          %vm1052 = vweird.f32 %v1045
          %vm1053 = vmor %vm1051, %vm1052
          %v1054 = vsel %vm1053, %v1045, %v1050
          %v1055 = vrsqrt.pop %v852
          %v1056 = vmul.f32 %v1055, %v852
          %v1057 = vmul.f32 %v1056, %v1055
          %v1058 = vmul.f32 0.5, %v1057
          %v1059 = vsub.f32 1.5, %v1058
          %v1060 = vmul.f32 %v1055, %v1059
          %vm1061 = vweird.f32 %v852
          %vm1062 = vweird.f32 %v1055
          %vm1063 = vmor %vm1061, %vm1062
          %v1064 = vsel %vm1063, %v1055, %v1060
          %v1065 = vrsqrt.pop %v853
          %v1066 = vmul.f32 %v1065, %v853
          %v1067 = vmul.f32 %v1066, %v1065
          %v1068 = vmul.f32 0.5, %v1067
          %v1069 = vsub.f32 1.5, %v1068
          %v1070 = vmul.f32 %v1065, %v1069
          %vm1071 = vweird.f32 %v853
          %vm1072 = vweird.f32 %v1065
          %vm1073 = vmor %vm1071, %vm1072
          %v1074 = vsel %vm1073, %v1065, %v1070
          %v1075 = vrsqrt.pop %v854
          %v1076 = vmul.f32 %v1075, %v854
          %v1077 = vmul.f32 %v1076, %v1075
          %v1078 = vmul.f32 0.5, %v1077
          %v1079 = vsub.f32 1.5, %v1078
          %v1080 = vmul.f32 %v1075, %v1079
          %vm1081 = vweird.f32 %v854
          %vm1082 = vweird.f32 %v1075
          %vm1083 = vmor %vm1081, %vm1082
          %v1084 = vsel %vm1083, %v1075, %v1080
          %v1085 = vrsqrt.pop %v855
          %v1086 = vmul.f32 %v1085, %v855
          %v1087 = vmul.f32 %v1086, %v1085
          %v1088 = vmul.f32 0.5, %v1087
          %v1089 = vsub.f32 1.5, %v1088
          %v1090 = vmul.f32 %v1085, %v1089
          %vm1091 = vweird.f32 %v855
          %vm1092 = vweird.f32 %v1085
          %vm1093 = vmor %vm1091, %vm1092
          %v1094 = vsel %vm1093, %v1085, %v1090
          %v1095 = vrsqrt.pop %v856
          %v1096 = vmul.f32 %v1095, %v856
          %v1097 = vmul.f32 %v1096, %v1095
          %v1098 = vmul.f32 0.5, %v1097
          %v1099 = vsub.f32 1.5, %v1098
          %v1100 = vmul.f32 %v1095, %v1099
          %vm1101 = vweird.f32 %v856
          %vm1102 = vweird.f32 %v1095
          %vm1103 = vmor %vm1101, %vm1102
          %v1104 = vsel %vm1103, %v1095, %v1100
          %v1105 = vrsqrt.pop %v857
          %v1106 = vmul.f32 %v1105, %v857
          %v1107 = vmul.f32 %v1106, %v1105
          %v1108 = vmul.f32 0.5, %v1107
          %v1109 = vsub.f32 1.5, %v1108
          %v1110 = vmul.f32 %v1105, %v1109
          %vm1111 = vweird.f32 %v857
          %vm1112 = vweird.f32 %v1105
          %vm1113 = vmor %vm1111, %vm1112
          %v1114 = vsel %vm1113, %v1105, %v1110
          %v1115 = vrsqrt.pop %v858
          %v1116 = vmul.f32 %v1115, %v858
          %v1117 = vmul.f32 %v1116, %v1115
          %v1118 = vmul.f32 0.5, %v1117
          %v1119 = vsub.f32 1.5, %v1118
          %v1120 = vmul.f32 %v1115, %v1119
          %vm1121 = vweird.f32 %v858
          %vm1122 = vweird.f32 %v1115
          %vm1123 = vmor %vm1121, %vm1122
          %v1124 = vsel %vm1123, %v1115, %v1120
          %v1125 = vrsqrt.pop %v859
          %v1126 = vmul.f32 %v1125, %v859
          %v1127 = vmul.f32 %v1126, %v1125
          %v1128 = vmul.f32 0.5, %v1127
          %v1129 = vsub.f32 1.5, %v1128
          %v1130 = vmul.f32 %v1125, %v1129
          %vm1131 = vweird.f32 %v859
          %vm1132 = vweird.f32 %v1125
          %vm1133 = vmor %vm1131, %vm1132
          %v1134 = vsel %vm1133, %v1125, %v1130
          %v1135 = vrsqrt.pop %v860
          %v1136 = vmul.f32 %v1135, %v860
          %v1137 = vmul.f32 %v1136, %v1135
          %v1138 = vmul.f32 0.5, %v1137
          %v1139 = vsub.f32 1.5, %v1138
          %v1140 = vmul.f32 %v1135, %v1139
          %vm1141 = vweird.f32 %v860
          %vm1142 = vweird.f32 %v1135
          %vm1143 = vmor %vm1141, %vm1142
          %v1144 = vsel %vm1143, %v1135, %v1140
          %v1145 = vrsqrt.pop %v861
          %v1146 = vmul.f32 %v1145, %v861
          %v1147 = vmul.f32 %v1146, %v1145
          %v1148 = vmul.f32 0.5, %v1147
          %v1149 = vsub.f32 1.5, %v1148
          %v1150 = vmul.f32 %v1145, %v1149
          %vm1151 = vweird.f32 %v861
          %vm1152 = vweird.f32 %v1145
          %vm1153 = vmor %vm1151, %vm1152
          %v1154 = vsel %vm1153, %v1145, %v1150
          %v1155 = vrsqrt.pop %v862
          %v1156 = vmul.f32 %v1155, %v862
          %v1157 = vmul.f32 %v1156, %v1155
          %v1158 = vmul.f32 0.5, %v1157
          %v1159 = vsub.f32 1.5, %v1158
          %v1160 = vmul.f32 %v1155, %v1159
          %vm1161 = vweird.f32 %v862
          %vm1162 = vweird.f32 %v1155
          %vm1163 = vmor %vm1161, %vm1162
          %v1164 = vsel %vm1163, %v1155, %v1160
          %v1165 = vrsqrt.pop %v863
          %v1166 = vmul.f32 %v1165, %v863
          %v1167 = vmul.f32 %v1166, %v1165
          %v1168 = vmul.f32 0.5, %v1167
          %v1169 = vsub.f32 1.5, %v1168
          %v1170 = vmul.f32 %v1165, %v1169
          %vm1171 = vweird.f32 %v863
          %vm1172 = vweird.f32 %v1165
          %vm1173 = vmor %vm1171, %vm1172
          %v1174 = vsel %vm1173, %v1165, %v1170
          %v1175 = vrsqrt.pop %v864
          %v1176 = vmul.f32 %v1175, %v864
          %v1177 = vmul.f32 %v1176, %v1175
          %v1178 = vmul.f32 0.5, %v1177
          %v1179 = vsub.f32 1.5, %v1178
          %v1180 = vmul.f32 %v1175, %v1179
          %vm1181 = vweird.f32 %v864
          %vm1182 = vweird.f32 %v1175
          %vm1183 = vmor %vm1181, %vm1182
          %v1184 = vsel %vm1183, %v1175, %v1180
          %v1185 = vmul.f32 %v577, %v874
          %v1186 = vmul.f32 %v578, %v874
          %v1187 = vmul.f32 %v579, %v884
          %v1188 = vmul.f32 %v580, %v884
          %v1189 = vmul.f32 %v581, %v894
          %v1190 = vmul.f32 %v582, %v894
          %v1191 = vmul.f32 %v583, %v904
          %v1192 = vmul.f32 %v584, %v904
          %v1193 = vmul.f32 %v585, %v914
          %v1194 = vmul.f32 %v586, %v914
          %v1195 = vmul.f32 %v587, %v924
          %v1196 = vmul.f32 %v588, %v924
          %v1197 = vmul.f32 %v589, %v934
          %v1198 = vmul.f32 %v590, %v934
          %v1199 = vmul.f32 %v591, %v944
          %v1200 = vmul.f32 %v592, %v944
          %v1201 = vmul.f32 %v593, %v954
          %v1202 = vmul.f32 %v594, %v954
          %v1203 = vmul.f32 %v595, %v964
          %v1204 = vmul.f32 %v596, %v964
          %v1205 = vmul.f32 %v597, %v974
          %v1206 = vmul.f32 %v598, %v974
          %v1207 = vmul.f32 %v599, %v984
          %v1208 = vmul.f32 %v600, %v984
          %v1209 = vmul.f32 %v601, %v994
          %v1210 = vmul.f32 %v602, %v994
          %v1211 = vmul.f32 %v603, %v1004
          %v1212 = vmul.f32 %v604, %v1004
          %v1213 = vmul.f32 %v605, %v1014
          %v1214 = vmul.f32 %v606, %v1014
          %v1215 = vmul.f32 %v607, %v1024
          %v1216 = vmul.f32 %v608, %v1024
          %v1217 = vmul.f32 %v609, %v1034
          %v1218 = vmul.f32 %v610, %v1034
          %v1219 = vmul.f32 %v611, %v1044
          %v1220 = vmul.f32 %v612, %v1044
          %v1221 = vmul.f32 %v613, %v1054
          %v1222 = vmul.f32 %v614, %v1054
          %v1223 = vmul.f32 %v615, %v1064
          %v1224 = vmul.f32 %v616, %v1064
          %v1225 = vmul.f32 %v617, %v1074
          %v1226 = vmul.f32 %v618, %v1074
          %v1227 = vmul.f32 %v619, %v1084
          %v1228 = vmul.f32 %v620, %v1084
          %v1229 = vmul.f32 %v621, %v1094
          %v1230 = vmul.f32 %v622, %v1094
          %v1231 = vmul.f32 %v623, %v1104
          %v1232 = vmul.f32 %v624, %v1104
          %v1233 = vmul.f32 %v625, %v1114
          %v1234 = vmul.f32 %v626, %v1114
          %v1235 = vmul.f32 %v627, %v1124
          %v1236 = vmul.f32 %v628, %v1124
          %v1237 = vmul.f32 %v629, %v1134
          %v1238 = vmul.f32 %v630, %v1134
          %v1239 = vmul.f32 %v631, %v1144
          %v1240 = vmul.f32 %v632, %v1144
          %v1241 = vmul.f32 %v633, %v1154
          %v1242 = vmul.f32 %v634, %v1154
          %v1243 = vmul.f32 %v635, %v1164
          %v1244 = vmul.f32 %v636, %v1164
          %v1245 = vmul.f32 %v637, %v1174
          %v1246 = vmul.f32 %v638, %v1174
          %v1247 = vmul.f32 %v639, %v1184
          %v1248 = vmul.f32 %v640, %v1184
          %v1250 = vperm.slane %v440, 0
          %v1251 = vperm.slane %v440, 1
          %v1254 = vmul.f32 %v1185, %v1250
          %v1255 = vmul.f32 %v1186, %v1251
          %v1256 = vmul.f32 %v1187, %v1250
          %v1257 = vmul.f32 %v1188, %v1251
          %v1258 = vmul.f32 %v1189, %v1250
          %v1259 = vmul.f32 %v1190, %v1251
          %v1260 = vmul.f32 %v1191, %v1250
          %v1261 = vmul.f32 %v1192, %v1251
          %v1262 = vmul.f32 %v1193, %v1250
          %v1263 = vmul.f32 %v1194, %v1251
          %v1264 = vmul.f32 %v1195, %v1250
          %v1265 = vmul.f32 %v1196, %v1251
          %v1266 = vmul.f32 %v1197, %v1250
          %v1267 = vmul.f32 %v1198, %v1251
          %v1268 = vmul.f32 %v1199, %v1250
          %v1269 = vmul.f32 %v1200, %v1251
          %v1270 = vmul.f32 %v1201, %v1250
          %v1271 = vmul.f32 %v1202, %v1251
          %v1272 = vmul.f32 %v1203, %v1250
          %v1273 = vmul.f32 %v1204, %v1251
          %v1274 = vmul.f32 %v1205, %v1250
          %v1275 = vmul.f32 %v1206, %v1251
          %v1276 = vmul.f32 %v1207, %v1250
          %v1277 = vmul.f32 %v1208, %v1251
          %v1278 = vmul.f32 %v1209, %v1250
          %v1279 = vmul.f32 %v1210, %v1251
          %v1280 = vmul.f32 %v1211, %v1250
          %v1281 = vmul.f32 %v1212, %v1251
          %v1282 = vmul.f32 %v1213, %v1250
          %v1283 = vmul.f32 %v1214, %v1251
          %v1284 = vmul.f32 %v1215, %v1250
          %v1285 = vmul.f32 %v1216, %v1251
          %v1286 = vmul.f32 %v1217, %v1250
          %v1287 = vmul.f32 %v1218, %v1251
          %v1288 = vmul.f32 %v1219, %v1250
          %v1289 = vmul.f32 %v1220, %v1251
          %v1290 = vmul.f32 %v1221, %v1250
          %v1291 = vmul.f32 %v1222, %v1251
          %v1292 = vmul.f32 %v1223, %v1250
          %v1293 = vmul.f32 %v1224, %v1251
          %v1294 = vmul.f32 %v1225, %v1250
          %v1295 = vmul.f32 %v1226, %v1251
          %v1296 = vmul.f32 %v1227, %v1250
          %v1297 = vmul.f32 %v1228, %v1251
          %v1298 = vmul.f32 %v1229, %v1250
          %v1299 = vmul.f32 %v1230, %v1251
          %v1300 = vmul.f32 %v1231, %v1250
          %v1301 = vmul.f32 %v1232, %v1251
          %v1302 = vmul.f32 %v1233, %v1250
          %v1303 = vmul.f32 %v1234, %v1251
          %v1304 = vmul.f32 %v1235, %v1250
          %v1305 = vmul.f32 %v1236, %v1251
          %v1306 = vmul.f32 %v1237, %v1250
          %v1307 = vmul.f32 %v1238, %v1251
          %v1308 = vmul.f32 %v1239, %v1250
          %v1309 = vmul.f32 %v1240, %v1251
          %v1310 = vmul.f32 %v1241, %v1250
          %v1311 = vmul.f32 %v1242, %v1251
          %v1312 = vmul.f32 %v1243, %v1250
          %v1313 = vmul.f32 %v1244, %v1251
          %v1314 = vmul.f32 %v1245, %v1250
          %v1315 = vmul.f32 %v1246, %v1251
          %v1316 = vmul.f32 %v1247, %v1250
          %v1317 = vmul.f32 %v1248, %v1251
          %v1319 = vperm.slane %v441, 0
          %v1320 = vperm.slane %v441, 1
          %v1323 = vadd.f32 %v1254, %v1319
          %v1324 = vadd.f32 %v1255, %v1320
          %v1325 = vadd.f32 %v1256, %v1319
          %v1326 = vadd.f32 %v1257, %v1320
          %v1327 = vadd.f32 %v1258, %v1319
          %v1328 = vadd.f32 %v1259, %v1320
          %v1329 = vadd.f32 %v1260, %v1319
          %v1330 = vadd.f32 %v1261, %v1320
          %v1331 = vadd.f32 %v1262, %v1319
          %v1332 = vadd.f32 %v1263, %v1320
          %v1333 = vadd.f32 %v1264, %v1319
          %v1334 = vadd.f32 %v1265, %v1320
          %v1335 = vadd.f32 %v1266, %v1319
          %v1336 = vadd.f32 %v1267, %v1320
          %v1337 = vadd.f32 %v1268, %v1319
          %v1338 = vadd.f32 %v1269, %v1320
          %v1339 = vadd.f32 %v1270, %v1319
          %v1340 = vadd.f32 %v1271, %v1320
          %v1341 = vadd.f32 %v1272, %v1319
          %v1342 = vadd.f32 %v1273, %v1320
          %v1343 = vadd.f32 %v1274, %v1319
          %v1344 = vadd.f32 %v1275, %v1320
          %v1345 = vadd.f32 %v1276, %v1319
          %v1346 = vadd.f32 %v1277, %v1320
          %v1347 = vadd.f32 %v1278, %v1319
          %v1348 = vadd.f32 %v1279, %v1320
          %v1349 = vadd.f32 %v1280, %v1319
          %v1350 = vadd.f32 %v1281, %v1320
          %v1351 = vadd.f32 %v1282, %v1319
          %v1352 = vadd.f32 %v1283, %v1320
          %v1353 = vadd.f32 %v1284, %v1319
          %v1354 = vadd.f32 %v1285, %v1320
          %v1355 = vadd.f32 %v1286, %v1319
          %v1356 = vadd.f32 %v1287, %v1320
          %v1357 = vadd.f32 %v1288, %v1319
          %v1358 = vadd.f32 %v1289, %v1320
          %v1359 = vadd.f32 %v1290, %v1319
          %v1360 = vadd.f32 %v1291, %v1320
          %v1361 = vadd.f32 %v1292, %v1319
          %v1362 = vadd.f32 %v1293, %v1320
          %v1363 = vadd.f32 %v1294, %v1319
          %v1364 = vadd.f32 %v1295, %v1320
          %v1365 = vadd.f32 %v1296, %v1319
          %v1366 = vadd.f32 %v1297, %v1320
          %v1367 = vadd.f32 %v1298, %v1319
          %v1368 = vadd.f32 %v1299, %v1320
          %v1369 = vadd.f32 %v1300, %v1319
          %v1370 = vadd.f32 %v1301, %v1320
          %v1371 = vadd.f32 %v1302, %v1319
          %v1372 = vadd.f32 %v1303, %v1320
          %v1373 = vadd.f32 %v1304, %v1319
          %v1374 = vadd.f32 %v1305, %v1320
          %v1375 = vadd.f32 %v1306, %v1319
          %v1376 = vadd.f32 %v1307, %v1320
          %v1377 = vadd.f32 %v1308, %v1319
          %v1378 = vadd.f32 %v1309, %v1320
          %v1379 = vadd.f32 %v1310, %v1319
          %v1380 = vadd.f32 %v1311, %v1320
          %v1381 = vadd.f32 %v1312, %v1319
          %v1382 = vadd.f32 %v1313, %v1320
          %v1383 = vadd.f32 %v1314, %v1319
          %v1384 = vadd.f32 %v1315, %v1320
          %v1385 = vadd.f32 %v1316, %v1319
          %v1386 = vadd.f32 %v1317, %v1320
          %v1387 = vpack.c.bf16 %v1324, %v1323
          %v1388 = vpack.c.bf16 %v1326, %v1325
          %v1389 = vpack.c.bf16 %v1328, %v1327
          %v1390 = vpack.c.bf16 %v1330, %v1329
          %v1391 = vpack.c.bf16 %v1332, %v1331
          %v1392 = vpack.c.bf16 %v1334, %v1333
          %v1393 = vpack.c.bf16 %v1336, %v1335
          %v1394 = vpack.c.bf16 %v1338, %v1337
          %v1395 = vpack.c.bf16 %v1340, %v1339
          %v1396 = vpack.c.bf16 %v1342, %v1341
          %v1397 = vpack.c.bf16 %v1344, %v1343
          %v1398 = vpack.c.bf16 %v1346, %v1345
          %v1399 = vpack.c.bf16 %v1348, %v1347
          %v1400 = vpack.c.bf16 %v1350, %v1349
          %v1401 = vpack.c.bf16 %v1352, %v1351
          %v1402 = vpack.c.bf16 %v1354, %v1353
          %v1403 = vpack.c.bf16 %v1356, %v1355
          %v1404 = vpack.c.bf16 %v1358, %v1357
          %v1405 = vpack.c.bf16 %v1360, %v1359
          %v1406 = vpack.c.bf16 %v1362, %v1361
          %v1407 = vpack.c.bf16 %v1364, %v1363
          %v1408 = vpack.c.bf16 %v1366, %v1365
          %v1409 = vpack.c.bf16 %v1368, %v1367
          %v1410 = vpack.c.bf16 %v1370, %v1369
          %v1411 = vpack.c.bf16 %v1372, %v1371
          %v1412 = vpack.c.bf16 %v1374, %v1373
          %v1413 = vpack.c.bf16 %v1376, %v1375
          %v1414 = vpack.c.bf16 %v1378, %v1377
          %v1415 = vpack.c.bf16 %v1380, %v1379
          %v1416 = vpack.c.bf16 %v1382, %v1381
          %v1417 = vpack.c.bf16 %v1384, %v1383
          %v1418 = vpack.c.bf16 %v1386, %v1385
          %1419 = vst [vmem:[#allocation2] sm:$0xff] %v1387
          %1420 = vst [vmem:[#allocation2 + $0x8] sm:$0xff] %v1388
          %1421 = vst [vmem:[#allocation2 + $0x10] sm:$0xff] %v1389
          %1422 = vst [vmem:[#allocation2 + $0x18] sm:$0xff] %v1390
          %1423 = vst [vmem:[#allocation2 + $0x20] sm:$0xff] %v1391
          %1424 = vst [vmem:[#allocation2 + $0x28] sm:$0xff] %v1392
          %1425 = vst [vmem:[#allocation2 + $0x30] sm:$0xff] %v1393
          %1426 = vst [vmem:[#allocation2 + $0x38] sm:$0xff] %v1394
          %1427 = vst [vmem:[#allocation2 + $0x40] sm:$0xff] %v1395
          %1428 = vst [vmem:[#allocation2 + $0x48] sm:$0xff] %v1396
          %1429 = vst [vmem:[#allocation2 + $0x50] sm:$0xff] %v1397
          %1430 = vst [vmem:[#allocation2 + $0x58] sm:$0xff] %v1398
          %1431 = vst [vmem:[#allocation2 + $0x60] sm:$0xff] %v1399
          %1432 = vst [vmem:[#allocation2 + $0x68] sm:$0xff] %v1400
          %1433 = vst [vmem:[#allocation2 + $0x70] sm:$0xff] %v1401
          %1434 = vst [vmem:[#allocation2 + $0x78] sm:$0xff] %v1402
          %1435 = vst [vmem:[#allocation2 + $0x80] sm:$0xff] %v1403
          %1436 = vst [vmem:[#allocation2 + $0x88] sm:$0xff] %v1404
          %1437 = vst [vmem:[#allocation2 + $0x90] sm:$0xff] %v1405
          %1438 = vst [vmem:[#allocation2 + $0x98] sm:$0xff] %v1406
          %1439 = vst [vmem:[#allocation2 + $0xa0] sm:$0xff] %v1407
          %1440 = vst [vmem:[#allocation2 + $0xa8] sm:$0xff] %v1408
          %1441 = vst [vmem:[#allocation2 + $0xb0] sm:$0xff] %v1409
          %1442 = vst [vmem:[#allocation2 + $0xb8] sm:$0xff] %v1410
          %1443 = vst [vmem:[#allocation2 + $0xc0] sm:$0xff] %v1411
          %1444 = vst [vmem:[#allocation2 + $0xc8] sm:$0xff] %v1412
          %1445 = vst [vmem:[#allocation2 + $0xd0] sm:$0xff] %v1413
          %1446 = vst [vmem:[#allocation2 + $0xd8] sm:$0xff] %v1414
          %1447 = vst [vmem:[#allocation2 + $0xe0] sm:$0xff] %v1415
          %1448 = vst [vmem:[#allocation2 + $0xe8] sm:$0xff] %v1416
          %1449 = vst [vmem:[#allocation2 + $0xf0] sm:$0xff] %v1417
          %1450 = vst [vmem:[#allocation2 + $0xf8] sm:$0xff] %v1418
        $region64: #{tpu_custom_call.1} parent=39 // pred_fallthru
          _
        %v1451 = vld [vmem:[#allocation2] sm:$0xff]
        %v1452 = vld [vmem:[#allocation2 + $0x8] sm:$0xff]
        %v1453 = vld [vmem:[#allocation2 + $0x10] sm:$0xff]
        %v1454 = vld [vmem:[#allocation2 + $0x18] sm:$0xff]
        %v1455 = vld [vmem:[#allocation2 + $0x20] sm:$0xff]
        %v1456 = vld [vmem:[#allocation2 + $0x28] sm:$0xff]
        %v1457 = vld [vmem:[#allocation2 + $0x30] sm:$0xff]
        %v1458 = vld [vmem:[#allocation2 + $0x38] sm:$0xff]
        %v1459 = vld [vmem:[#allocation2 + $0x40] sm:$0xff]
        %v1460 = vld [vmem:[#allocation2 + $0x48] sm:$0xff]
        %v1461 = vld [vmem:[#allocation2 + $0x50] sm:$0xff]
        %v1462 = vld [vmem:[#allocation2 + $0x58] sm:$0xff]
        %v1463 = vld [vmem:[#allocation2 + $0x60] sm:$0xff]
        %v1464 = vld [vmem:[#allocation2 + $0x68] sm:$0xff]
        %v1465 = vld [vmem:[#allocation2 + $0x70] sm:$0xff]
        %v1466 = vld [vmem:[#allocation2 + $0x78] sm:$0xff]
        %v1467 = vld [vmem:[#allocation2 + $0x80] sm:$0xff]
        %v1468 = vld [vmem:[#allocation2 + $0x88] sm:$0xff]
        %v1469 = vld [vmem:[#allocation2 + $0x90] sm:$0xff]
        %v1470 = vld [vmem:[#allocation2 + $0x98] sm:$0xff]
        %v1471 = vld [vmem:[#allocation2 + $0xa0] sm:$0xff]
        %v1472 = vld [vmem:[#allocation2 + $0xa8] sm:$0xff]
        %v1473 = vld [vmem:[#allocation2 + $0xb0] sm:$0xff]
        %v1474 = vld [vmem:[#allocation2 + $0xb8] sm:$0xff]
        %v1475 = vld [vmem:[#allocation2 + $0xc0] sm:$0xff]
        %v1476 = vld [vmem:[#allocation2 + $0xc8] sm:$0xff]
        %v1477 = vld [vmem:[#allocation2 + $0xd0] sm:$0xff]
        %v1478 = vld [vmem:[#allocation2 + $0xd8] sm:$0xff]
        %v1479 = vld [vmem:[#allocation2 + $0xe0] sm:$0xff]
        %v1480 = vld [vmem:[#allocation2 + $0xe8] sm:$0xff]
        %v1481 = vld [vmem:[#allocation2 + $0xf0] sm:$0xff]
        %v1482 = vld [vmem:[#allocation2 + $0xf8] sm:$0xff]
        %v1483 = vld [vmem:[%s319] sm:$0xff]
        %v1484 = vld [vmem:[%s319 + $0x8] sm:$0xf]
        %v1485 = vld [vmem:[%s319 + $0xc] sm:$0xff]
        %v1486 = vld [vmem:[%s319 + $0x14] sm:$0xf]
        %v1487 = vld [vmem:[%s319 + $0x18] sm:$0xff]
        %v1488 = vld [vmem:[%s319 + $0x20] sm:$0xf]
        %v1489 = vld [vmem:[%s319 + $0x24] sm:$0xff]
        %v1490 = vld [vmem:[%s319 + $0x2c] sm:$0xf]
        %v1491 = vld [vmem:[%s319 + $0x30] sm:$0xff]
        %v1492 = vld [vmem:[%s319 + $0x38] sm:$0xf]
        %v1493 = vld [vmem:[%s319 + $0x3c] sm:$0xff]
        %v1494 = vld [vmem:[%s319 + $0x44] sm:$0xf]
        %v1495 = vld [vmem:[%s319 + $0x48] sm:$0xff]
        %v1496 = vld [vmem:[%s319 + $0x50] sm:$0xf]
        %v1497 = vld [vmem:[%s319 + $0x54] sm:$0xff]
        %v1498 = vld [vmem:[%s319 + $0x5c] sm:$0xf]
        %v1499 = vld [vmem:[%s319 + $0x60] sm:$0xff]
        %v1500 = vld [vmem:[%s319 + $0x68] sm:$0xf]
        %v1501 = vld [vmem:[%s319 + $0x6c] sm:$0xff]
        %v1502 = vld [vmem:[%s319 + $0x74] sm:$0xf]
        %v1503 = vld [vmem:[%s319 + $0x78] sm:$0xff]
        %v1504 = vld [vmem:[%s319 + $0x80] sm:$0xf]
        %v1505 = vld [vmem:[%s319 + $0x84] sm:$0xff]
        %v1506 = vld [vmem:[%s319 + $0x8c] sm:$0xf]
        %v1507 = vld [vmem:[%s319 + $0x90] sm:$0xff]
        %v1508 = vld [vmem:[%s319 + $0x98] sm:$0xf]
        %v1509 = vld [vmem:[%s319 + $0x9c] sm:$0xff]
        %v1510 = vld [vmem:[%s319 + $0xa4] sm:$0xf]
        %v1511 = vld [vmem:[%s319 + $0xa8] sm:$0xff]
        %v1512 = vld [vmem:[%s319 + $0xb0] sm:$0xf]
        %v1513 = vld [vmem:[%s319 + $0xb4] sm:$0xff]
        %v1514 = vld [vmem:[%s319 + $0xbc] sm:$0xf]
        %v1515 = vld [vmem:[%s319 + $0xc0] sm:$0xff]
        %v1516 = vld [vmem:[%s319 + $0xc8] sm:$0xf]
        %v1517 = vld [vmem:[%s319 + $0xcc] sm:$0xff]
        %v1518 = vld [vmem:[%s319 + $0xd4] sm:$0xf]
        %v1519 = vld [vmem:[%s319 + $0xd8] sm:$0xff]
        %v1520 = vld [vmem:[%s319 + $0xe0] sm:$0xf]
        %v1521 = vld [vmem:[%s319 + $0xe4] sm:$0xff]
        %v1522 = vld [vmem:[%s319 + $0xec] sm:$0xf]
        %v1523 = vld [vmem:[%s319 + $0xf0] sm:$0xff]
        %v1524 = vld [vmem:[%s319 + $0xf8] sm:$0xf]
        %v1525 = vld [vmem:[%s319 + $0xfc] sm:$0xff]
        %v1526 = vld [vmem:[%s319 + $0x104] sm:$0xf]
        %v1527 = vld [vmem:[%s319 + $0x108] sm:$0xff]
        %v1528 = vld [vmem:[%s319 + $0x110] sm:$0xf]
        %v1529 = vld [vmem:[%s319 + $0x114] sm:$0xff]
        %v1530 = vld [vmem:[%s319 + $0x11c] sm:$0xf]
        %v1531 = vld [vmem:[%s319 + $0x120] sm:$0xff]
        %v1532 = vld [vmem:[%s319 + $0x128] sm:$0xf]
        %v1533 = vld [vmem:[%s319 + $0x12c] sm:$0xff]
        %v1534 = vld [vmem:[%s319 + $0x134] sm:$0xf]
        %v1535 = vld [vmem:[%s319 + $0x138] sm:$0xff]
        %v1536 = vld [vmem:[%s319 + $0x140] sm:$0xf]
        %v1537 = vld [vmem:[%s319 + $0x144] sm:$0xff]
        %v1538 = vld [vmem:[%s319 + $0x14c] sm:$0xf]
        %v1539 = vld [vmem:[%s319 + $0x150] sm:$0xff]
        %v1540 = vld [vmem:[%s319 + $0x158] sm:$0xf]
        %v1541 = vld [vmem:[%s319 + $0x15c] sm:$0xff]
        %v1542 = vld [vmem:[%s319 + $0x164] sm:$0xf]
        %v1543 = vld [vmem:[%s319 + $0x168] sm:$0xff]
        %v1544 = vld [vmem:[%s319 + $0x170] sm:$0xf]
        %v1545 = vld [vmem:[%s319 + $0x174] sm:$0xff]
        %v1546 = vld [vmem:[%s319 + $0x17c] sm:$0xf]
        %v1547 = vld [vmem:[%s329] sm:$0x7]
        %v1549 = vperm.slane %v1547, 0
        %v1550 = vperm.slane %v1547, 1
        %v1551 = vperm.slane %v1547, 2
        %v1587 = vunpack.c.l.b16 %v1451
        %v1588 = vunpack.c.h.b16 %v1451
        %v1589 = vunpack.c.l.b16 %v1452
        %v1590 = vunpack.c.h.b16 %v1452
        %v1591 = vunpack.c.l.b16 %v1453
        %v1592 = vunpack.c.h.b16 %v1453
        %v1593 = vunpack.c.l.b16 %v1454
        %v1594 = vunpack.c.h.b16 %v1454
        %v1595 = vunpack.c.l.b16 %v1455
        %v1596 = vunpack.c.h.b16 %v1455
        %v1597 = vunpack.c.l.b16 %v1456
        %v1598 = vunpack.c.h.b16 %v1456
        %v1599 = vunpack.c.l.b16 %v1457
        %v1600 = vunpack.c.h.b16 %v1457
        %v1601 = vunpack.c.l.b16 %v1458
        %v1602 = vunpack.c.h.b16 %v1458
        %v1603 = vunpack.c.l.b16 %v1459
        %v1604 = vunpack.c.h.b16 %v1459
        %v1605 = vunpack.c.l.b16 %v1460
        %v1606 = vunpack.c.h.b16 %v1460
        %v1607 = vunpack.c.l.b16 %v1461
        %v1608 = vunpack.c.h.b16 %v1461
        %v1609 = vunpack.c.l.b16 %v1462
        %v1610 = vunpack.c.h.b16 %v1462
        %v1611 = vunpack.c.l.b16 %v1463
        %v1612 = vunpack.c.h.b16 %v1463
        %v1613 = vunpack.c.l.b16 %v1464
        %v1614 = vunpack.c.h.b16 %v1464
        %v1615 = vunpack.c.l.b16 %v1465
        %v1616 = vunpack.c.h.b16 %v1465
        %v1617 = vunpack.c.l.b16 %v1466
        %v1618 = vunpack.c.h.b16 %v1466
        %v1619 = vunpack.c.l.b16 %v1467
        %v1620 = vunpack.c.h.b16 %v1467
        %v1621 = vunpack.c.l.b16 %v1468
        %v1622 = vunpack.c.h.b16 %v1468
        %v1623 = vunpack.c.l.b16 %v1469
        %v1624 = vunpack.c.h.b16 %v1469
        %v1625 = vunpack.c.l.b16 %v1470
        %v1626 = vunpack.c.h.b16 %v1470
        %v1627 = vunpack.c.l.b16 %v1471
        %v1628 = vunpack.c.h.b16 %v1471
        %v1629 = vunpack.c.l.b16 %v1472
        %v1630 = vunpack.c.h.b16 %v1472
        %v1631 = vunpack.c.l.b16 %v1473
        %v1632 = vunpack.c.h.b16 %v1473
        %v1633 = vunpack.c.l.b16 %v1474
        %v1634 = vunpack.c.h.b16 %v1474
        %v1635 = vunpack.c.l.b16 %v1475
        %v1636 = vunpack.c.h.b16 %v1475
        %v1637 = vunpack.c.l.b16 %v1476
        %v1638 = vunpack.c.h.b16 %v1476
        %v1639 = vunpack.c.l.b16 %v1477
        %v1640 = vunpack.c.h.b16 %v1477
        %v1641 = vunpack.c.l.b16 %v1478
        %v1642 = vunpack.c.h.b16 %v1478
        %v1643 = vunpack.c.l.b16 %v1479
        %v1644 = vunpack.c.h.b16 %v1479
        %v1645 = vunpack.c.l.b16 %v1480
        %v1646 = vunpack.c.h.b16 %v1480
        %v1647 = vunpack.c.l.b16 %v1481
        %v1648 = vunpack.c.h.b16 %v1481
        %v1649 = vunpack.c.l.b16 %v1482
        %v1650 = vunpack.c.h.b16 %v1482
        %v1651 = vpack.c.b16 %v1589, %v1587
        %v1652 = vpack.c.b16 %v1590, %v1588
        %v1653 = vpack.c.b16 %v1593, %v1591
        %v1654 = vpack.c.b16 %v1594, %v1592
        %v1655 = vpack.c.b16 %v1597, %v1595
        %v1656 = vpack.c.b16 %v1598, %v1596
        %v1657 = vpack.c.b16 %v1601, %v1599
        %v1658 = vpack.c.b16 %v1602, %v1600
        %v1659 = vpack.c.b16 %v1605, %v1603
        %v1660 = vpack.c.b16 %v1606, %v1604
        %v1661 = vpack.c.b16 %v1609, %v1607
        %v1662 = vpack.c.b16 %v1610, %v1608
        %v1663 = vpack.c.b16 %v1613, %v1611
        %v1664 = vpack.c.b16 %v1614, %v1612
        %v1665 = vpack.c.b16 %v1617, %v1615
        %v1666 = vpack.c.b16 %v1618, %v1616
        %v1667 = vpack.c.b16 %v1621, %v1619
        %v1668 = vpack.c.b16 %v1622, %v1620
        %v1669 = vpack.c.b16 %v1625, %v1623
        %v1670 = vpack.c.b16 %v1626, %v1624
        %v1671 = vpack.c.b16 %v1629, %v1627
        %v1672 = vpack.c.b16 %v1630, %v1628
        %v1673 = vpack.c.b16 %v1633, %v1631
        %v1674 = vpack.c.b16 %v1634, %v1632
        %v1675 = vpack.c.b16 %v1637, %v1635
        %v1676 = vpack.c.b16 %v1638, %v1636
        %v1677 = vpack.c.b16 %v1641, %v1639
        %v1678 = vpack.c.b16 %v1642, %v1640
        %v1679 = vpack.c.b16 %v1645, %v1643
        %v1680 = vpack.c.b16 %v1646, %v1644
        %v1681 = vpack.c.b16 %v1649, %v1647
        %v1682 = vpack.c.b16 %v1650, %v1648
        %v1779 = vunpack.c.l.b16 %v1483
        %v1780 = vunpack.c.h.b16 %v1483
        %v1781 = vunpack.c.l.b16 %v1484
        %v1782 = vunpack.c.l.b16 %v1485
        %v1783 = vunpack.c.h.b16 %v1485
        %v1784 = vunpack.c.l.b16 %v1486
        %v1785 = vunpack.c.l.b16 %v1487
        %v1786 = vunpack.c.h.b16 %v1487
        %v1787 = vunpack.c.l.b16 %v1488
        %v1788 = vunpack.c.l.b16 %v1489
        %v1789 = vunpack.c.h.b16 %v1489
        %v1790 = vunpack.c.l.b16 %v1490
        %v1791 = vunpack.c.l.b16 %v1491
        %v1792 = vunpack.c.h.b16 %v1491
        %v1793 = vunpack.c.l.b16 %v1492
        %v1794 = vunpack.c.l.b16 %v1493
        %v1795 = vunpack.c.h.b16 %v1493
        %v1796 = vunpack.c.l.b16 %v1494
        %v1797 = vunpack.c.l.b16 %v1495
        %v1798 = vunpack.c.h.b16 %v1495
        %v1799 = vunpack.c.l.b16 %v1496
        %v1800 = vunpack.c.l.b16 %v1497
        %v1801 = vunpack.c.h.b16 %v1497
        %v1802 = vunpack.c.l.b16 %v1498
        %v1803 = vunpack.c.l.b16 %v1499
        %v1804 = vunpack.c.h.b16 %v1499
        %v1805 = vunpack.c.l.b16 %v1500
        %v1806 = vunpack.c.l.b16 %v1501
        %v1807 = vunpack.c.h.b16 %v1501
        %v1808 = vunpack.c.l.b16 %v1502
        %v1809 = vunpack.c.l.b16 %v1503
        %v1810 = vunpack.c.h.b16 %v1503
        %v1811 = vunpack.c.l.b16 %v1504
        %v1812 = vunpack.c.l.b16 %v1505
        %v1813 = vunpack.c.h.b16 %v1505
        %v1814 = vunpack.c.l.b16 %v1506
        %v1815 = vunpack.c.l.b16 %v1507
        %v1816 = vunpack.c.h.b16 %v1507
        %v1817 = vunpack.c.l.b16 %v1508
        %v1818 = vunpack.c.l.b16 %v1509
        %v1819 = vunpack.c.h.b16 %v1509
        %v1820 = vunpack.c.l.b16 %v1510
        %v1821 = vunpack.c.l.b16 %v1511
        %v1822 = vunpack.c.h.b16 %v1511
        %v1823 = vunpack.c.l.b16 %v1512
        %v1824 = vunpack.c.l.b16 %v1513
        %v1825 = vunpack.c.h.b16 %v1513
        %v1826 = vunpack.c.l.b16 %v1514
        %v1827 = vunpack.c.l.b16 %v1515
        %v1828 = vunpack.c.h.b16 %v1515
        %v1829 = vunpack.c.l.b16 %v1516
        %v1830 = vunpack.c.l.b16 %v1517
        %v1831 = vunpack.c.h.b16 %v1517
        %v1832 = vunpack.c.l.b16 %v1518
        %v1833 = vunpack.c.l.b16 %v1519
        %v1834 = vunpack.c.h.b16 %v1519
        %v1835 = vunpack.c.l.b16 %v1520
        %v1836 = vunpack.c.l.b16 %v1521
        %v1837 = vunpack.c.h.b16 %v1521
        %v1838 = vunpack.c.l.b16 %v1522
        %v1839 = vunpack.c.l.b16 %v1523
        %v1840 = vunpack.c.h.b16 %v1523
        %v1841 = vunpack.c.l.b16 %v1524
        %v1842 = vunpack.c.l.b16 %v1525
        %v1843 = vunpack.c.h.b16 %v1525
        %v1844 = vunpack.c.l.b16 %v1526
        %v1845 = vunpack.c.l.b16 %v1527
        %v1846 = vunpack.c.h.b16 %v1527
        %v1847 = vunpack.c.l.b16 %v1528
        %v1848 = vunpack.c.l.b16 %v1529
        %v1849 = vunpack.c.h.b16 %v1529
        %v1850 = vunpack.c.l.b16 %v1530
        %v1851 = vunpack.c.l.b16 %v1531
        %v1852 = vunpack.c.h.b16 %v1531
        %v1853 = vunpack.c.l.b16 %v1532
        %v1854 = vunpack.c.l.b16 %v1533
        %v1855 = vunpack.c.h.b16 %v1533
        %v1856 = vunpack.c.l.b16 %v1534
        %v1857 = vunpack.c.l.b16 %v1535
        %v1858 = vunpack.c.h.b16 %v1535
        %v1859 = vunpack.c.l.b16 %v1536
        %v1860 = vunpack.c.l.b16 %v1537
        %v1861 = vunpack.c.h.b16 %v1537
        %v1862 = vunpack.c.l.b16 %v1538
        %v1863 = vunpack.c.l.b16 %v1539
        %v1864 = vunpack.c.h.b16 %v1539
        %v1865 = vunpack.c.l.b16 %v1540
        %v1866 = vunpack.c.l.b16 %v1541
        %v1867 = vunpack.c.h.b16 %v1541
        %v1868 = vunpack.c.l.b16 %v1542
        %v1869 = vunpack.c.l.b16 %v1543
        %v1870 = vunpack.c.h.b16 %v1543
        %v1871 = vunpack.c.l.b16 %v1544
        %v1872 = vunpack.c.l.b16 %v1545
        %v1873 = vunpack.c.h.b16 %v1545
        %v1874 = vunpack.c.l.b16 %v1546
        %v1875 = vpack.c.b16 %v1782, %v1779
        %v1876 = vpack.c.b16 %v1783, %v1780
        %v1877 = vpack.c.b16 %v1784, %v1781
        %v1878 = vpack.c.b16 %v1788, %v1785
        %v1879 = vpack.c.b16 %v1789, %v1786
        %v1880 = vpack.c.b16 %v1790, %v1787
        %v1881 = vpack.c.b16 %v1794, %v1791
        %v1882 = vpack.c.b16 %v1795, %v1792
        %v1883 = vpack.c.b16 %v1796, %v1793
        %v1884 = vpack.c.b16 %v1800, %v1797
        %v1885 = vpack.c.b16 %v1801, %v1798
        %v1886 = vpack.c.b16 %v1802, %v1799
        %v1887 = vpack.c.b16 %v1806, %v1803
        %v1888 = vpack.c.b16 %v1807, %v1804
        %v1889 = vpack.c.b16 %v1808, %v1805
        %v1890 = vpack.c.b16 %v1812, %v1809
        %v1891 = vpack.c.b16 %v1813, %v1810
        %v1892 = vpack.c.b16 %v1814, %v1811
        %v1893 = vpack.c.b16 %v1818, %v1815
        %v1894 = vpack.c.b16 %v1819, %v1816
        %v1895 = vpack.c.b16 %v1820, %v1817
        %v1896 = vpack.c.b16 %v1824, %v1821
        %v1897 = vpack.c.b16 %v1825, %v1822
        %v1898 = vpack.c.b16 %v1826, %v1823
        %v1899 = vpack.c.b16 %v1830, %v1827
        %v1900 = vpack.c.b16 %v1831, %v1828
        %v1901 = vpack.c.b16 %v1832, %v1829
        %v1902 = vpack.c.b16 %v1836, %v1833
        %v1903 = vpack.c.b16 %v1837, %v1834
        %v1904 = vpack.c.b16 %v1838, %v1835
        %v1905 = vpack.c.b16 %v1842, %v1839
        %v1906 = vpack.c.b16 %v1843, %v1840
        %v1907 = vpack.c.b16 %v1844, %v1841
        %v1908 = vpack.c.b16 %v1848, %v1845
        %v1909 = vpack.c.b16 %v1849, %v1846
        %v1910 = vpack.c.b16 %v1850, %v1847
        %v1911 = vpack.c.b16 %v1854, %v1851
        %v1912 = vpack.c.b16 %v1855, %v1852
        %v1913 = vpack.c.b16 %v1856, %v1853
        %v1914 = vpack.c.b16 %v1860, %v1857
        %v1915 = vpack.c.b16 %v1861, %v1858
        %v1916 = vpack.c.b16 %v1862, %v1859
        %v1917 = vpack.c.b16 %v1866, %v1863
        %v1918 = vpack.c.b16 %v1867, %v1864
        %v1919 = vpack.c.b16 %v1868, %v1865
        %v1920 = vpack.c.b16 %v1872, %v1869
        %v1921 = vpack.c.b16 %v1873, %v1870
        %v1922 = vpack.c.b16 %v1874, %v1871
        %1971 = vmatpush.bf16.msra.mxu0 %v1896
        %1972 = vmatpush.bf16.msra.mxu0 %v1893
        %1973 = vmatpush.bf16.msra.mxu0 %v1890
        %1974 = vmatpush.bf16.msra.mxu0 %v1887
        %1975 = vmatpush.bf16.msra.mxu0 %v1884
        %1976 = vmatpush.bf16.msra.mxu0 %v1881
        %1977 = vmatpush.bf16.msra.mxu0 %v1878
        %1978 = vmatpush.bf16.msra.mxu0 %v1875
        %1979 = vmatmul.bf16.gmra.mxu0 %v1651
        %v1980 = vpop.f32.mrf.mxu0
        %v1981 = vadd.f32 %v1549, %v1980
        %v1982 = vpop.f32.mrf.mxu0
        %v1983 = vadd.f32 %v1549, %v1982
        %1984 = vmatmul.bf16.gmra.mxu0 %v1653
        %v1985 = vpop.f32.mrf.mxu0
        %v1986 = vadd.f32 %v1549, %v1985
        %v1987 = vpop.f32.mrf.mxu0
        %v1988 = vadd.f32 %v1549, %v1987
        %1989 = vmatmul.bf16.gmra.mxu0 %v1655
        %v1990 = vpop.f32.mrf.mxu0
        %v1991 = vadd.f32 %v1549, %v1990
        %v1992 = vpop.f32.mrf.mxu0
        %v1993 = vadd.f32 %v1549, %v1992
        %1994 = vmatmul.bf16.gmra.mxu0 %v1657
        %v1995 = vpop.f32.mrf.mxu0
        %v1996 = vadd.f32 %v1549, %v1995
        %v1997 = vpop.f32.mrf.mxu0
        %v1998 = vadd.f32 %v1549, %v1997
        %1999 = vmatmul.bf16.gmra.mxu0 %v1659
        %v2000 = vpop.f32.mrf.mxu0
        %v2001 = vadd.f32 %v1549, %v2000
        %v2002 = vpop.f32.mrf.mxu0
        %v2003 = vadd.f32 %v1549, %v2002
        %2004 = vmatmul.bf16.gmra.mxu0 %v1661
        %v2005 = vpop.f32.mrf.mxu0
        %v2006 = vadd.f32 %v1549, %v2005
        %v2007 = vpop.f32.mrf.mxu0
        %v2008 = vadd.f32 %v1549, %v2007
        %2009 = vmatmul.bf16.gmra.mxu0 %v1663
        %v2010 = vpop.f32.mrf.mxu0
        %v2011 = vadd.f32 %v1549, %v2010
        %v2012 = vpop.f32.mrf.mxu0
        %v2013 = vadd.f32 %v1549, %v2012
        %2014 = vmatmul.bf16.gmra.mxu0 %v1665
        %v2015 = vpop.f32.mrf.mxu0
        %v2016 = vadd.f32 %v1549, %v2015
        %v2017 = vpop.f32.mrf.mxu0
        %v2018 = vadd.f32 %v1549, %v2017
        %2019 = vmatmul.bf16.gmra.mxu0 %v1667
        %v2020 = vpop.f32.mrf.mxu0
        %v2021 = vadd.f32 %v1549, %v2020
        %v2022 = vpop.f32.mrf.mxu0
        %v2023 = vadd.f32 %v1549, %v2022
        %2024 = vmatmul.bf16.gmra.mxu0 %v1669
        %v2025 = vpop.f32.mrf.mxu0
        %v2026 = vadd.f32 %v1549, %v2025
        %v2027 = vpop.f32.mrf.mxu0
        %v2028 = vadd.f32 %v1549, %v2027
        %2029 = vmatmul.bf16.gmra.mxu0 %v1671
        %v2030 = vpop.f32.mrf.mxu0
        %v2031 = vadd.f32 %v1549, %v2030
        %v2032 = vpop.f32.mrf.mxu0
        %v2033 = vadd.f32 %v1549, %v2032
        %2034 = vmatmul.bf16.gmra.mxu0 %v1673
        %v2035 = vpop.f32.mrf.mxu0
        %v2036 = vadd.f32 %v1549, %v2035
        %v2037 = vpop.f32.mrf.mxu0
        %v2038 = vadd.f32 %v1549, %v2037
        %2039 = vmatmul.bf16.gmra.mxu0 %v1675
        %v2040 = vpop.f32.mrf.mxu0
        %v2041 = vadd.f32 %v1549, %v2040
        %v2042 = vpop.f32.mrf.mxu0
        %v2043 = vadd.f32 %v1549, %v2042
        %2044 = vmatmul.bf16.gmra.mxu0 %v1677
        %v2045 = vpop.f32.mrf.mxu0
        %v2046 = vadd.f32 %v1549, %v2045
        %v2047 = vpop.f32.mrf.mxu0
        %v2048 = vadd.f32 %v1549, %v2047
        %2049 = vmatmul.bf16.gmra.mxu0 %v1679
        %v2050 = vpop.f32.mrf.mxu0
        %v2051 = vadd.f32 %v1549, %v2050
        %v2052 = vpop.f32.mrf.mxu0
        %v2053 = vadd.f32 %v1549, %v2052
        %2054 = vmatmul.bf16.gmra.mxu0 %v1681
        %v2055 = vpop.f32.mrf.mxu0
        %v2056 = vadd.f32 %v1549, %v2055
        %v2057 = vpop.f32.mrf.mxu0
        %v2058 = vadd.f32 %v1549, %v2057
        %2059 = vdwg.mxu0
        %2060 = vmatpush.bf16.msra.mxu0 %v1920
        %2061 = vmatpush.bf16.msra.mxu0 %v1917
        %2062 = vmatpush.bf16.msra.mxu0 %v1914
        %2063 = vmatpush.bf16.msra.mxu0 %v1911
        %2064 = vmatpush.bf16.msra.mxu0 %v1908
        %2065 = vmatpush.bf16.msra.mxu0 %v1905
        %2066 = vmatpush.bf16.msra.mxu0 %v1902
        %2067 = vmatpush.bf16.msra.mxu0 %v1899
        %2068 = vmatmul.bf16.gmra.mxu0 %v1652
        %v2069 = vpop.f32.mrf.mxu0
        %v2070 = vadd.f32 %v1981, %v2069
        %v2071 = vpop.f32.mrf.mxu0
        %v2072 = vadd.f32 %v1983, %v2071
        %2073 = vmatmul.bf16.gmra.mxu0 %v1654
        %v2074 = vpop.f32.mrf.mxu0
        %v2075 = vadd.f32 %v1986, %v2074
        %v2076 = vpop.f32.mrf.mxu0
        %v2077 = vadd.f32 %v1988, %v2076
        %2078 = vmatmul.bf16.gmra.mxu0 %v1656
        %v2079 = vpop.f32.mrf.mxu0
        %v2080 = vadd.f32 %v1991, %v2079
        %v2081 = vpop.f32.mrf.mxu0
        %v2082 = vadd.f32 %v1993, %v2081
        %2083 = vmatmul.bf16.gmra.mxu0 %v1658
        %v2084 = vpop.f32.mrf.mxu0
        %v2085 = vadd.f32 %v1996, %v2084
        %v2086 = vpop.f32.mrf.mxu0
        %v2087 = vadd.f32 %v1998, %v2086
        %2088 = vmatmul.bf16.gmra.mxu0 %v1660
        %v2089 = vpop.f32.mrf.mxu0
        %v2090 = vadd.f32 %v2001, %v2089
        %v2091 = vpop.f32.mrf.mxu0
        %v2092 = vadd.f32 %v2003, %v2091
        %2093 = vmatmul.bf16.gmra.mxu0 %v1662
        %v2094 = vpop.f32.mrf.mxu0
        %v2095 = vadd.f32 %v2006, %v2094
        %v2096 = vpop.f32.mrf.mxu0
        %v2097 = vadd.f32 %v2008, %v2096
        %2098 = vmatmul.bf16.gmra.mxu0 %v1664
        %v2099 = vpop.f32.mrf.mxu0
        %v2100 = vadd.f32 %v2011, %v2099
        %v2101 = vpop.f32.mrf.mxu0
        %v2102 = vadd.f32 %v2013, %v2101
        %2103 = vmatmul.bf16.gmra.mxu0 %v1666
        %v2104 = vpop.f32.mrf.mxu0
        %v2105 = vadd.f32 %v2016, %v2104
        %v2106 = vpop.f32.mrf.mxu0
        %v2107 = vadd.f32 %v2018, %v2106
        %2108 = vmatmul.bf16.gmra.mxu0 %v1668
        %v2109 = vpop.f32.mrf.mxu0
        %v2110 = vadd.f32 %v2021, %v2109
        %v2111 = vpop.f32.mrf.mxu0
        %v2112 = vadd.f32 %v2023, %v2111
        %2113 = vmatmul.bf16.gmra.mxu0 %v1670
        %v2114 = vpop.f32.mrf.mxu0
        %v2115 = vadd.f32 %v2026, %v2114
        %v2116 = vpop.f32.mrf.mxu0
        %v2117 = vadd.f32 %v2028, %v2116
        %2118 = vmatmul.bf16.gmra.mxu0 %v1672
        %v2119 = vpop.f32.mrf.mxu0
        %v2120 = vadd.f32 %v2031, %v2119
        %v2121 = vpop.f32.mrf.mxu0
        %v2122 = vadd.f32 %v2033, %v2121
        %2123 = vmatmul.bf16.gmra.mxu0 %v1674
        %v2124 = vpop.f32.mrf.mxu0
        %v2125 = vadd.f32 %v2036, %v2124
        %v2126 = vpop.f32.mrf.mxu0
        %v2127 = vadd.f32 %v2038, %v2126
        %2128 = vmatmul.bf16.gmra.mxu0 %v1676
        %v2129 = vpop.f32.mrf.mxu0
        %v2130 = vadd.f32 %v2041, %v2129
        %v2131 = vpop.f32.mrf.mxu0
        %v2132 = vadd.f32 %v2043, %v2131
        %2133 = vmatmul.bf16.gmra.mxu0 %v1678
        %v2134 = vpop.f32.mrf.mxu0
        %v2135 = vadd.f32 %v2046, %v2134
        %v2136 = vpop.f32.mrf.mxu0
        %v2137 = vadd.f32 %v2048, %v2136
        %2138 = vmatmul.bf16.gmra.mxu0 %v1680
        %v2139 = vpop.f32.mrf.mxu0
        %v2140 = vadd.f32 %v2051, %v2139
        %v2141 = vpop.f32.mrf.mxu0
        %v2142 = vadd.f32 %v2053, %v2141
        %2143 = vmatmul.bf16.gmra.mxu0 %v1682
        %v2144 = vpop.f32.mrf.mxu0
        %v2145 = vadd.f32 %v2056, %v2144
        %v2146 = vpop.f32.mrf.mxu0
        %v2147 = vadd.f32 %v2058, %v2146
        %2148 = vdwg.mxu0
        %2149 = vmatpush.bf16.msra.mxu0 %v1897
        %2150 = vmatpush.bf16.msra.mxu0 %v1894
        %2151 = vmatpush.bf16.msra.mxu0 %v1891
        %2152 = vmatpush.bf16.msra.mxu0 %v1888
        %2153 = vmatpush.bf16.msra.mxu0 %v1885
        %2154 = vmatpush.bf16.msra.mxu0 %v1882
        %2155 = vmatpush.bf16.msra.mxu0 %v1879
        %2156 = vmatpush.bf16.msra.mxu0 %v1876
        %2157 = vmatmul.bf16.gmra.mxu0 %v1651
        %v2158 = vpop.f32.mrf.mxu0
        %v2159 = vadd.f32 %v1550, %v2158
        %v2160 = vpop.f32.mrf.mxu0
        %v2161 = vadd.f32 %v1550, %v2160
        %2162 = vmatmul.bf16.gmra.mxu0 %v1653
        %v2163 = vpop.f32.mrf.mxu0
        %v2164 = vadd.f32 %v1550, %v2163
        %v2165 = vpop.f32.mrf.mxu0
        %v2166 = vadd.f32 %v1550, %v2165
        %2167 = vmatmul.bf16.gmra.mxu0 %v1655
        %v2168 = vpop.f32.mrf.mxu0
        %v2169 = vadd.f32 %v1550, %v2168
        %v2170 = vpop.f32.mrf.mxu0
        %v2171 = vadd.f32 %v1550, %v2170
        %2172 = vmatmul.bf16.gmra.mxu0 %v1657
        %v2173 = vpop.f32.mrf.mxu0
        %v2174 = vadd.f32 %v1550, %v2173
        %v2175 = vpop.f32.mrf.mxu0
        %v2176 = vadd.f32 %v1550, %v2175
        %2177 = vmatmul.bf16.gmra.mxu0 %v1659
        %v2178 = vpop.f32.mrf.mxu0
        %v2179 = vadd.f32 %v1550, %v2178
        %v2180 = vpop.f32.mrf.mxu0
        %v2181 = vadd.f32 %v1550, %v2180
        %2182 = vmatmul.bf16.gmra.mxu0 %v1661
        %v2183 = vpop.f32.mrf.mxu0
        %v2184 = vadd.f32 %v1550, %v2183
        %v2185 = vpop.f32.mrf.mxu0
        %v2186 = vadd.f32 %v1550, %v2185
        %2187 = vmatmul.bf16.gmra.mxu0 %v1663
        %v2188 = vpop.f32.mrf.mxu0
        %v2189 = vadd.f32 %v1550, %v2188
        %v2190 = vpop.f32.mrf.mxu0
        %v2191 = vadd.f32 %v1550, %v2190
        %2192 = vmatmul.bf16.gmra.mxu0 %v1665
        %v2193 = vpop.f32.mrf.mxu0
        %v2194 = vadd.f32 %v1550, %v2193
        %v2195 = vpop.f32.mrf.mxu0
        %v2196 = vadd.f32 %v1550, %v2195
        %2197 = vmatmul.bf16.gmra.mxu0 %v1667
        %v2198 = vpop.f32.mrf.mxu0
        %v2199 = vadd.f32 %v1550, %v2198
        %v2200 = vpop.f32.mrf.mxu0
        %v2201 = vadd.f32 %v1550, %v2200
        %2202 = vmatmul.bf16.gmra.mxu0 %v1669
        %v2203 = vpop.f32.mrf.mxu0
        %v2204 = vadd.f32 %v1550, %v2203
        %v2205 = vpop.f32.mrf.mxu0
        %v2206 = vadd.f32 %v1550, %v2205
        %2207 = vmatmul.bf16.gmra.mxu0 %v1671
        %v2208 = vpop.f32.mrf.mxu0
        %v2209 = vadd.f32 %v1550, %v2208
        %v2210 = vpop.f32.mrf.mxu0
        %v2211 = vadd.f32 %v1550, %v2210
        %2212 = vmatmul.bf16.gmra.mxu0 %v1673
        %v2213 = vpop.f32.mrf.mxu0
        %v2214 = vadd.f32 %v1550, %v2213
        %v2215 = vpop.f32.mrf.mxu0
        %v2216 = vadd.f32 %v1550, %v2215
        %2217 = vmatmul.bf16.gmra.mxu0 %v1675
        %v2218 = vpop.f32.mrf.mxu0
        %v2219 = vadd.f32 %v1550, %v2218
        %v2220 = vpop.f32.mrf.mxu0
        %v2221 = vadd.f32 %v1550, %v2220
        %2222 = vmatmul.bf16.gmra.mxu0 %v1677
        %v2223 = vpop.f32.mrf.mxu0
        %v2224 = vadd.f32 %v1550, %v2223
        %v2225 = vpop.f32.mrf.mxu0
        %v2226 = vadd.f32 %v1550, %v2225
        %2227 = vmatmul.bf16.gmra.mxu0 %v1679
        %v2228 = vpop.f32.mrf.mxu0
        %v2229 = vadd.f32 %v1550, %v2228
        %v2230 = vpop.f32.mrf.mxu0
        %v2231 = vadd.f32 %v1550, %v2230
        %2232 = vmatmul.bf16.gmra.mxu0 %v1681
        %v2233 = vpop.f32.mrf.mxu0
        %v2234 = vadd.f32 %v1550, %v2233
        %v2235 = vpop.f32.mrf.mxu0
        %v2236 = vadd.f32 %v1550, %v2235
        %2237 = vdwg.mxu0
        %2238 = vmatpush.bf16.msra.mxu0 %v1921
        %2239 = vmatpush.bf16.msra.mxu0 %v1918
        %2240 = vmatpush.bf16.msra.mxu0 %v1915
        %2241 = vmatpush.bf16.msra.mxu0 %v1912
        %2242 = vmatpush.bf16.msra.mxu0 %v1909
        %2243 = vmatpush.bf16.msra.mxu0 %v1906
        %2244 = vmatpush.bf16.msra.mxu0 %v1903
        %2245 = vmatpush.bf16.msra.mxu0 %v1900
        %2246 = vmatmul.bf16.gmra.mxu0 %v1652
        %v2247 = vpop.f32.mrf.mxu0
        %v2248 = vadd.f32 %v2159, %v2247
        %v2249 = vpop.f32.mrf.mxu0
        %v2250 = vadd.f32 %v2161, %v2249
        %2251 = vmatmul.bf16.gmra.mxu0 %v1654
        %v2252 = vpop.f32.mrf.mxu0
        %v2253 = vadd.f32 %v2164, %v2252
        %v2254 = vpop.f32.mrf.mxu0
        %v2255 = vadd.f32 %v2166, %v2254
        %2256 = vmatmul.bf16.gmra.mxu0 %v1656
        %v2257 = vpop.f32.mrf.mxu0
        %v2258 = vadd.f32 %v2169, %v2257
        %v2259 = vpop.f32.mrf.mxu0
        %v2260 = vadd.f32 %v2171, %v2259
        %2261 = vmatmul.bf16.gmra.mxu0 %v1658
        %v2262 = vpop.f32.mrf.mxu0
        %v2263 = vadd.f32 %v2174, %v2262
        %v2264 = vpop.f32.mrf.mxu0
        %v2265 = vadd.f32 %v2176, %v2264
        %2266 = vmatmul.bf16.gmra.mxu0 %v1660
        %v2267 = vpop.f32.mrf.mxu0
        %v2268 = vadd.f32 %v2179, %v2267
        %v2269 = vpop.f32.mrf.mxu0
        %v2270 = vadd.f32 %v2181, %v2269
        %2271 = vmatmul.bf16.gmra.mxu0 %v1662
        %v2272 = vpop.f32.mrf.mxu0
        %v2273 = vadd.f32 %v2184, %v2272
        %v2274 = vpop.f32.mrf.mxu0
        %v2275 = vadd.f32 %v2186, %v2274
        %2276 = vmatmul.bf16.gmra.mxu0 %v1664
        %v2277 = vpop.f32.mrf.mxu0
        %v2278 = vadd.f32 %v2189, %v2277
        %v2279 = vpop.f32.mrf.mxu0
        %v2280 = vadd.f32 %v2191, %v2279
        %2281 = vmatmul.bf16.gmra.mxu0 %v1666
        %v2282 = vpop.f32.mrf.mxu0
        %v2283 = vadd.f32 %v2194, %v2282
        %v2284 = vpop.f32.mrf.mxu0
        %v2285 = vadd.f32 %v2196, %v2284
        %2286 = vmatmul.bf16.gmra.mxu0 %v1668
        %v2287 = vpop.f32.mrf.mxu0
        %v2288 = vadd.f32 %v2199, %v2287
        %v2289 = vpop.f32.mrf.mxu0
        %v2290 = vadd.f32 %v2201, %v2289
        %2291 = vmatmul.bf16.gmra.mxu0 %v1670
        %v2292 = vpop.f32.mrf.mxu0
        %v2293 = vadd.f32 %v2204, %v2292
        %v2294 = vpop.f32.mrf.mxu0
        %v2295 = vadd.f32 %v2206, %v2294
        %2296 = vmatmul.bf16.gmra.mxu0 %v1672
        %v2297 = vpop.f32.mrf.mxu0
        %v2298 = vadd.f32 %v2209, %v2297
        %v2299 = vpop.f32.mrf.mxu0
        %v2300 = vadd.f32 %v2211, %v2299
        %2301 = vmatmul.bf16.gmra.mxu0 %v1674
        %v2302 = vpop.f32.mrf.mxu0
        %v2303 = vadd.f32 %v2214, %v2302
        %v2304 = vpop.f32.mrf.mxu0
        %v2305 = vadd.f32 %v2216, %v2304
        %2306 = vmatmul.bf16.gmra.mxu0 %v1676
        %v2307 = vpop.f32.mrf.mxu0
        %v2308 = vadd.f32 %v2219, %v2307
        %v2309 = vpop.f32.mrf.mxu0
        %v2310 = vadd.f32 %v2221, %v2309
        %2311 = vmatmul.bf16.gmra.mxu0 %v1678
        %v2312 = vpop.f32.mrf.mxu0
        %v2313 = vadd.f32 %v2224, %v2312
        %v2314 = vpop.f32.mrf.mxu0
        %v2315 = vadd.f32 %v2226, %v2314
        %2316 = vmatmul.bf16.gmra.mxu0 %v1680
        %v2317 = vpop.f32.mrf.mxu0
        %v2318 = vadd.f32 %v2229, %v2317
        %v2319 = vpop.f32.mrf.mxu0
        %v2320 = vadd.f32 %v2231, %v2319
        %2321 = vmatmul.bf16.gmra.mxu0 %v1682
        %v2322 = vpop.f32.mrf.mxu0
        %v2323 = vadd.f32 %v2234, %v2322
        %v2324 = vpop.f32.mrf.mxu0
        %v2325 = vadd.f32 %v2236, %v2324
        %2326 = vdwg.mxu0
        %2327 = vmatpush.bf16.msra.mxu0 %v1898
        %2328 = vmatpush.bf16.msra.mxu0 %v1895
        %2329 = vmatpush.bf16.msra.mxu0 %v1892
        %2330 = vmatpush.bf16.msra.mxu0 %v1889
        %2331 = vmatpush.bf16.msra.mxu0 %v1886
        %2332 = vmatpush.bf16.msra.mxu0 %v1883
        %2333 = vmatpush.bf16.msra.mxu0 %v1880
        %2334 = vmatpush.bf16.msra.mxu0 %v1877
        %2335 = vmatmul.bf16.gmra.mxu0 %v1651
        %v2336 = vpop.f32.mrf.mxu0
        %v2337 = vadd.f32 %v1551, %v2336
        %v2338 = vpop.f32.mrf.mxu0
        %v2339 = vadd.f32 %v1551, %v2338
        %2340 = vmatmul.bf16.gmra.mxu0 %v1653
        %v2341 = vpop.f32.mrf.mxu0
        %v2342 = vadd.f32 %v1551, %v2341
        %v2343 = vpop.f32.mrf.mxu0
        %v2344 = vadd.f32 %v1551, %v2343
        %2345 = vmatmul.bf16.gmra.mxu0 %v1655
        %v2346 = vpop.f32.mrf.mxu0
        %v2347 = vadd.f32 %v1551, %v2346
        %v2348 = vpop.f32.mrf.mxu0
        %v2349 = vadd.f32 %v1551, %v2348
        %2350 = vmatmul.bf16.gmra.mxu0 %v1657
        %v2351 = vpop.f32.mrf.mxu0
        %v2352 = vadd.f32 %v1551, %v2351
        %v2353 = vpop.f32.mrf.mxu0
        %v2354 = vadd.f32 %v1551, %v2353
        %2355 = vmatmul.bf16.gmra.mxu0 %v1659
        %v2356 = vpop.f32.mrf.mxu0
        %v2357 = vadd.f32 %v1551, %v2356
        %v2358 = vpop.f32.mrf.mxu0
        %v2359 = vadd.f32 %v1551, %v2358
        %2360 = vmatmul.bf16.gmra.mxu0 %v1661
        %v2361 = vpop.f32.mrf.mxu0
        %v2362 = vadd.f32 %v1551, %v2361
        %v2363 = vpop.f32.mrf.mxu0
        %v2364 = vadd.f32 %v1551, %v2363
        %2365 = vmatmul.bf16.gmra.mxu0 %v1663
        %v2366 = vpop.f32.mrf.mxu0
        %v2367 = vadd.f32 %v1551, %v2366
        %v2368 = vpop.f32.mrf.mxu0
        %v2369 = vadd.f32 %v1551, %v2368
        %2370 = vmatmul.bf16.gmra.mxu0 %v1665
        %v2371 = vpop.f32.mrf.mxu0
        %v2372 = vadd.f32 %v1551, %v2371
        %v2373 = vpop.f32.mrf.mxu0
        %v2374 = vadd.f32 %v1551, %v2373
        %2375 = vmatmul.bf16.gmra.mxu0 %v1667
        %v2376 = vpop.f32.mrf.mxu0
        %v2377 = vadd.f32 %v1551, %v2376
        %v2378 = vpop.f32.mrf.mxu0
        %v2379 = vadd.f32 %v1551, %v2378
        %2380 = vmatmul.bf16.gmra.mxu0 %v1669
        %v2381 = vpop.f32.mrf.mxu0
        %v2382 = vadd.f32 %v1551, %v2381
        %v2383 = vpop.f32.mrf.mxu0
        %v2384 = vadd.f32 %v1551, %v2383
        %2385 = vmatmul.bf16.gmra.mxu0 %v1671
        %v2386 = vpop.f32.mrf.mxu0
        %v2387 = vadd.f32 %v1551, %v2386
        %v2388 = vpop.f32.mrf.mxu0
        %v2389 = vadd.f32 %v1551, %v2388
        %2390 = vmatmul.bf16.gmra.mxu0 %v1673
        %v2391 = vpop.f32.mrf.mxu0
        %v2392 = vadd.f32 %v1551, %v2391
        %v2393 = vpop.f32.mrf.mxu0
        %v2394 = vadd.f32 %v1551, %v2393
        %2395 = vmatmul.bf16.gmra.mxu0 %v1675
        %v2396 = vpop.f32.mrf.mxu0
        %v2397 = vadd.f32 %v1551, %v2396
        %v2398 = vpop.f32.mrf.mxu0
        %v2399 = vadd.f32 %v1551, %v2398
        %2400 = vmatmul.bf16.gmra.mxu0 %v1677
        %v2401 = vpop.f32.mrf.mxu0
        %v2402 = vadd.f32 %v1551, %v2401
        %v2403 = vpop.f32.mrf.mxu0
        %v2404 = vadd.f32 %v1551, %v2403
        %2405 = vmatmul.bf16.gmra.mxu0 %v1679
        %v2406 = vpop.f32.mrf.mxu0
        %v2407 = vadd.f32 %v1551, %v2406
        %v2408 = vpop.f32.mrf.mxu0
        %v2409 = vadd.f32 %v1551, %v2408
        %2410 = vmatmul.bf16.gmra.mxu0 %v1681
        %v2411 = vpop.f32.mrf.mxu0
        %v2412 = vadd.f32 %v1551, %v2411
        %v2413 = vpop.f32.mrf.mxu0
        %v2414 = vadd.f32 %v1551, %v2413
        %2415 = vdwg.mxu0
        %2416 = vmatpush.bf16.msra.mxu0 %v1922
        %2417 = vmatpush.bf16.msra.mxu0 %v1919
        %2418 = vmatpush.bf16.msra.mxu0 %v1916
        %2419 = vmatpush.bf16.msra.mxu0 %v1913
        %2420 = vmatpush.bf16.msra.mxu0 %v1910
        %2421 = vmatpush.bf16.msra.mxu0 %v1907
        %2422 = vmatpush.bf16.msra.mxu0 %v1904
        %2423 = vmatpush.bf16.msra.mxu0 %v1901
        %2424 = vmatmul.bf16.gmra.mxu0 %v1652
        %v2425 = vpop.f32.mrf.mxu0
        %v2426 = vadd.f32 %v2337, %v2425
        %v2427 = vpop.f32.mrf.mxu0
        %v2428 = vadd.f32 %v2339, %v2427
        %2429 = vmatmul.bf16.gmra.mxu0 %v1654
        %v2430 = vpop.f32.mrf.mxu0
        %v2431 = vadd.f32 %v2342, %v2430
        %v2432 = vpop.f32.mrf.mxu0
        %v2433 = vadd.f32 %v2344, %v2432
        %2434 = vmatmul.bf16.gmra.mxu0 %v1656
        %v2435 = vpop.f32.mrf.mxu0
        %v2436 = vadd.f32 %v2347, %v2435
        %v2437 = vpop.f32.mrf.mxu0
        %v2438 = vadd.f32 %v2349, %v2437
        %2439 = vmatmul.bf16.gmra.mxu0 %v1658
        %v2440 = vpop.f32.mrf.mxu0
        %v2441 = vadd.f32 %v2352, %v2440
        %v2442 = vpop.f32.mrf.mxu0
        %v2443 = vadd.f32 %v2354, %v2442
        %2444 = vmatmul.bf16.gmra.mxu0 %v1660
        %v2445 = vpop.f32.mrf.mxu0
        %v2446 = vadd.f32 %v2357, %v2445
        %v2447 = vpop.f32.mrf.mxu0
        %v2448 = vadd.f32 %v2359, %v2447
        %2449 = vmatmul.bf16.gmra.mxu0 %v1662
        %v2450 = vpop.f32.mrf.mxu0
        %v2451 = vadd.f32 %v2362, %v2450
        %v2452 = vpop.f32.mrf.mxu0
        %v2453 = vadd.f32 %v2364, %v2452
        %2454 = vmatmul.bf16.gmra.mxu0 %v1664
        %v2455 = vpop.f32.mrf.mxu0
        %v2456 = vadd.f32 %v2367, %v2455
        %v2457 = vpop.f32.mrf.mxu0
        %v2458 = vadd.f32 %v2369, %v2457
        %2459 = vmatmul.bf16.gmra.mxu0 %v1666
        %v2460 = vpop.f32.mrf.mxu0
        %v2461 = vadd.f32 %v2372, %v2460
        %v2462 = vpop.f32.mrf.mxu0
        %v2463 = vadd.f32 %v2374, %v2462
        %2464 = vmatmul.bf16.gmra.mxu0 %v1668
        %v2465 = vpop.f32.mrf.mxu0
        %v2466 = vadd.f32 %v2377, %v2465
        %v2467 = vpop.f32.mrf.mxu0
        %v2468 = vadd.f32 %v2379, %v2467
        %2469 = vmatmul.bf16.gmra.mxu0 %v1670
        %v2470 = vpop.f32.mrf.mxu0
        %v2471 = vadd.f32 %v2382, %v2470
        %v2472 = vpop.f32.mrf.mxu0
        %v2473 = vadd.f32 %v2384, %v2472
        %2474 = vmatmul.bf16.gmra.mxu0 %v1672
        %v2475 = vpop.f32.mrf.mxu0
        %v2476 = vadd.f32 %v2387, %v2475
        %v2477 = vpop.f32.mrf.mxu0
        %v2478 = vadd.f32 %v2389, %v2477
        %2479 = vmatmul.bf16.gmra.mxu0 %v1674
        %v2480 = vpop.f32.mrf.mxu0
        %v2481 = vadd.f32 %v2392, %v2480
        %v2482 = vpop.f32.mrf.mxu0
        %v2483 = vadd.f32 %v2394, %v2482
        %2484 = vmatmul.bf16.gmra.mxu0 %v1676
        %v2485 = vpop.f32.mrf.mxu0
        %v2486 = vadd.f32 %v2397, %v2485
        %v2487 = vpop.f32.mrf.mxu0
        %v2488 = vadd.f32 %v2399, %v2487
        %2489 = vmatmul.bf16.gmra.mxu0 %v1678
        %v2490 = vpop.f32.mrf.mxu0
        %v2491 = vadd.f32 %v2402, %v2490
        %v2492 = vpop.f32.mrf.mxu0
        %v2493 = vadd.f32 %v2404, %v2492
        %2494 = vmatmul.bf16.gmra.mxu0 %v1680
        %v2495 = vpop.f32.mrf.mxu0
        %v2496 = vadd.f32 %v2407, %v2495
        %v2497 = vpop.f32.mrf.mxu0
        %v2498 = vadd.f32 %v2409, %v2497
        %2499 = vmatmul.bf16.gmra.mxu0 %v1682
        %v2500 = vpop.f32.mrf.mxu0
        %v2501 = vadd.f32 %v2412, %v2500
        %v2502 = vpop.f32.mrf.mxu0
        %v2503 = vadd.f32 %v2414, %v2502
        %2504 = vdwg.mxu0
        %v2505 = vpack.c.bf16 %v2248, %v2070
        %v2506 = vpack.c.bf16 %v2426, %v2426
        %v2507 = vpack.c.bf16 %v2250, %v2072
        %v2508 = vpack.c.bf16 %v2428, %v2428
        %v2509 = vpack.c.bf16 %v2253, %v2075
        %v2510 = vpack.c.bf16 %v2431, %v2431
        %v2511 = vpack.c.bf16 %v2255, %v2077
        %v2512 = vpack.c.bf16 %v2433, %v2433
        %v2513 = vpack.c.bf16 %v2258, %v2080
        %v2514 = vpack.c.bf16 %v2436, %v2436
        %v2515 = vpack.c.bf16 %v2260, %v2082
        %v2516 = vpack.c.bf16 %v2438, %v2438
        %v2517 = vpack.c.bf16 %v2263, %v2085
        %v2518 = vpack.c.bf16 %v2441, %v2441
        %v2519 = vpack.c.bf16 %v2265, %v2087
        %v2520 = vpack.c.bf16 %v2443, %v2443
        %v2521 = vpack.c.bf16 %v2268, %v2090
        %v2522 = vpack.c.bf16 %v2446, %v2446
        %v2523 = vpack.c.bf16 %v2270, %v2092
        %v2524 = vpack.c.bf16 %v2448, %v2448
        %v2525 = vpack.c.bf16 %v2273, %v2095
        %v2526 = vpack.c.bf16 %v2451, %v2451
        %v2527 = vpack.c.bf16 %v2275, %v2097
        %v2528 = vpack.c.bf16 %v2453, %v2453
        %v2529 = vpack.c.bf16 %v2278, %v2100
        %v2530 = vpack.c.bf16 %v2456, %v2456
        %v2531 = vpack.c.bf16 %v2280, %v2102
        %v2532 = vpack.c.bf16 %v2458, %v2458
        %v2533 = vpack.c.bf16 %v2283, %v2105
        %v2534 = vpack.c.bf16 %v2461, %v2461
        %v2535 = vpack.c.bf16 %v2285, %v2107
        %v2536 = vpack.c.bf16 %v2463, %v2463
        %v2537 = vpack.c.bf16 %v2288, %v2110
        %v2538 = vpack.c.bf16 %v2466, %v2466
        %v2539 = vpack.c.bf16 %v2290, %v2112
        %v2540 = vpack.c.bf16 %v2468, %v2468
        %v2541 = vpack.c.bf16 %v2293, %v2115
        %v2542 = vpack.c.bf16 %v2471, %v2471
        %v2543 = vpack.c.bf16 %v2295, %v2117
        %v2544 = vpack.c.bf16 %v2473, %v2473
        %v2545 = vpack.c.bf16 %v2298, %v2120
        %v2546 = vpack.c.bf16 %v2476, %v2476
        %v2547 = vpack.c.bf16 %v2300, %v2122
        %v2548 = vpack.c.bf16 %v2478, %v2478
        %v2549 = vpack.c.bf16 %v2303, %v2125
        %v2550 = vpack.c.bf16 %v2481, %v2481
        %v2551 = vpack.c.bf16 %v2305, %v2127
        %v2552 = vpack.c.bf16 %v2483, %v2483
        %v2553 = vpack.c.bf16 %v2308, %v2130
        %v2554 = vpack.c.bf16 %v2486, %v2486
        %v2555 = vpack.c.bf16 %v2310, %v2132
        %v2556 = vpack.c.bf16 %v2488, %v2488
        %v2557 = vpack.c.bf16 %v2313, %v2135
        %v2558 = vpack.c.bf16 %v2491, %v2491
        %v2559 = vpack.c.bf16 %v2315, %v2137
        %v2560 = vpack.c.bf16 %v2493, %v2493
        %v2561 = vpack.c.bf16 %v2318, %v2140
        %v2562 = vpack.c.bf16 %v2496, %v2496
        %v2563 = vpack.c.bf16 %v2320, %v2142
        %v2564 = vpack.c.bf16 %v2498, %v2498
        %v2565 = vpack.c.bf16 %v2323, %v2145
        %v2566 = vpack.c.bf16 %v2501, %v2501
        %v2567 = vpack.c.bf16 %v2325, %v2147
        %v2568 = vpack.c.bf16 %v2503, %v2503
        %2569 = vst [vmem:[%s366] sm:$0xff] %v2505
        %2570 = vst [vmem:[%s366 + $0x8] sm:$0xf] %v2506
        %2571 = vst [vmem:[%s366 + $0xc] sm:$0xff] %v2507
        %2572 = vst [vmem:[%s366 + $0x14] sm:$0xf] %v2508
        %2573 = vst [vmem:[%s366 + $0x18] sm:$0xff] %v2509
        %2574 = vst [vmem:[%s366 + $0x20] sm:$0xf] %v2510
        %2575 = vst [vmem:[%s366 + $0x24] sm:$0xff] %v2511
        %2576 = vst [vmem:[%s366 + $0x2c] sm:$0xf] %v2512
        %2577 = vst [vmem:[%s366 + $0x30] sm:$0xff] %v2513
        %2578 = vst [vmem:[%s366 + $0x38] sm:$0xf] %v2514
        %2579 = vst [vmem:[%s366 + $0x3c] sm:$0xff] %v2515
        %2580 = vst [vmem:[%s366 + $0x44] sm:$0xf] %v2516
        %2581 = vst [vmem:[%s366 + $0x48] sm:$0xff] %v2517
        %2582 = vst [vmem:[%s366 + $0x50] sm:$0xf] %v2518
        %2583 = vst [vmem:[%s366 + $0x54] sm:$0xff] %v2519
        %2584 = vst [vmem:[%s366 + $0x5c] sm:$0xf] %v2520
        %2585 = vst [vmem:[%s366 + $0x60] sm:$0xff] %v2521
        %2586 = vst [vmem:[%s366 + $0x68] sm:$0xf] %v2522
        %2587 = vst [vmem:[%s366 + $0x6c] sm:$0xff] %v2523
        %2588 = vst [vmem:[%s366 + $0x74] sm:$0xf] %v2524
        %2589 = vst [vmem:[%s366 + $0x78] sm:$0xff] %v2525
        %2590 = vst [vmem:[%s366 + $0x80] sm:$0xf] %v2526
        %2591 = vst [vmem:[%s366 + $0x84] sm:$0xff] %v2527
        %2592 = vst [vmem:[%s366 + $0x8c] sm:$0xf] %v2528
        %2593 = vst [vmem:[%s366 + $0x90] sm:$0xff] %v2529
        %2594 = vst [vmem:[%s366 + $0x98] sm:$0xf] %v2530
        %2595 = vst [vmem:[%s366 + $0x9c] sm:$0xff] %v2531
        %2596 = vst [vmem:[%s366 + $0xa4] sm:$0xf] %v2532
        %2597 = vst [vmem:[%s366 + $0xa8] sm:$0xff] %v2533
        %2598 = vst [vmem:[%s366 + $0xb0] sm:$0xf] %v2534
        %2599 = vst [vmem:[%s366 + $0xb4] sm:$0xff] %v2535
        %2600 = vst [vmem:[%s366 + $0xbc] sm:$0xf] %v2536
        %2601 = vst [vmem:[%s366 + $0xc0] sm:$0xff] %v2537
        %2602 = vst [vmem:[%s366 + $0xc8] sm:$0xf] %v2538
        %2603 = vst [vmem:[%s366 + $0xcc] sm:$0xff] %v2539
        %2604 = vst [vmem:[%s366 + $0xd4] sm:$0xf] %v2540
        %2605 = vst [vmem:[%s366 + $0xd8] sm:$0xff] %v2541
        %2606 = vst [vmem:[%s366 + $0xe0] sm:$0xf] %v2542
        %2607 = vst [vmem:[%s366 + $0xe4] sm:$0xff] %v2543
        %2608 = vst [vmem:[%s366 + $0xec] sm:$0xf] %v2544
        %2609 = vst [vmem:[%s366 + $0xf0] sm:$0xff] %v2545
        %2610 = vst [vmem:[%s366 + $0xf8] sm:$0xf] %v2546
        %2611 = vst [vmem:[%s366 + $0xfc] sm:$0xff] %v2547
        %2612 = vst [vmem:[%s366 + $0x104] sm:$0xf] %v2548
        %2613 = vst [vmem:[%s366 + $0x108] sm:$0xff] %v2549
        %2614 = vst [vmem:[%s366 + $0x110] sm:$0xf] %v2550
        %2615 = vst [vmem:[%s366 + $0x114] sm:$0xff] %v2551
        %2616 = vst [vmem:[%s366 + $0x11c] sm:$0xf] %v2552
        %2617 = vst [vmem:[%s366 + $0x120] sm:$0xff] %v2553
        %2618 = vst [vmem:[%s366 + $0x128] sm:$0xf] %v2554
        %2619 = vst [vmem:[%s366 + $0x12c] sm:$0xff] %v2555
        %2620 = vst [vmem:[%s366 + $0x134] sm:$0xf] %v2556
        %2621 = vst [vmem:[%s366 + $0x138] sm:$0xff] %v2557
        %2622 = vst [vmem:[%s366 + $0x140] sm:$0xf] %v2558
        %2623 = vst [vmem:[%s366 + $0x144] sm:$0xff] %v2559
        %2624 = vst [vmem:[%s366 + $0x14c] sm:$0xf] %v2560
        %2625 = vst [vmem:[%s366 + $0x150] sm:$0xff] %v2561
        %2626 = vst [vmem:[%s366 + $0x158] sm:$0xf] %v2562
        %2627 = vst [vmem:[%s366 + $0x15c] sm:$0xff] %v2563
        %2628 = vst [vmem:[%s366 + $0x164] sm:$0xf] %v2564
        %2629 = vst [vmem:[%s366 + $0x168] sm:$0xff] %v2565
        %2630 = vst [vmem:[%s366 + $0x170] sm:$0xf] %v2566
        %2631 = vst [vmem:[%s366 + $0x174] sm:$0xff] %v2567
        %2632 = vst [vmem:[%s366 + $0x17c] sm:$0xf] %v2568
        %s2633 = sand.u32 %s168, 1
        %s2634 = scalar_lea.sflag [#allocation5], %s2633
        %s2635 = sand.u32 %s168, 1
        %s2636 = smul.addr %s2635, 384
        %s2637 = scalar_lea.vmem [#allocation12], %s2636
        // Predicated region
        $region65: #{tpu_custom_call.1} parent=39 // pred_check
          %p2638 = pneg %p178
        $region66: #{tpu_custom_call.1} parent=39 // pred_check_branch
          %2640 = sbr.rel (%p2638) target = $region68
        $region67: #{tpu_custom_call.1} parent=39 // pred_region
          %s2641 = smul.u32 32, %s30
          %s2642 = smul.u32 3, %s31
          %2644 = vsyncadd %s2634, 0
          %s2645 = smul.addr %s2641, 6
          %s2646 = sadd.s32 %s2642, %s2645
          %s2647 = smul.addr %s2646, 4
          %s2648 = scalar_lea.hbm %s5, %s2647
          %s2649 = sshll.u32 %s2637, 4
          %s2650 = int_to_ptr.vmem [resolvable:$true] %s2649
          %s2651 = sshll.u32 %s2648, 4
          %s2652 = int_to_ptr.hbm [resolvable:$true] %s2651
          %2657 = dma.vmem_to_hbm [thread:$0]  %s2650, 6144, %s2652, %s2634, 192, 384, 12
        $region68: #{tpu_custom_call.1} parent=39 // pred_fallthru
          _
      $region40: #{tpu_custom_call.1} parent=5 // pred_fallthru
        _
      %p2658 = scmp.le.s32.totalorder 2, %s21
      // Predicated region
      $region69: #{tpu_custom_call.1} parent=5 // pred_check
        %p2659 = pneg %p2658
      $region70: #{tpu_custom_call.1} parent=5 // pred_check_branch
        %2661 = sbr.rel (%p2659) target = $region72
      $region71: #{tpu_custom_call.1} parent=5 // pred_region
        %s2662 = ssub.s32 %s21, 2
        // Predicated region
        $region73: #{tpu_custom_call.1} parent=71 // pred_check
          %p2663 = pneg %p184
        $region74: #{tpu_custom_call.1} parent=71 // pred_check_branch
          %2665 = sbr.rel (%p2663) target = $region76
        $region75: #{tpu_custom_call.1} parent=71 // pred_region
          %s2666 = sand.u32 %s169, 1
          %s2667 = scalar_lea.sflag [#allocation5], %s2666
          %s2668 = sand.u32 %s169, 1
          %s2669 = smul.addr %s2668, 384
          %s2670 = scalar_lea.vmem [#allocation12], %s2669
          %2672 = dma.done %s2667, 6144
        $region76: #{tpu_custom_call.1} parent=71 // pred_fallthru
          _
      $region72: #{tpu_custom_call.1} parent=5 // pred_fallthru
        _
    $region6: #{tpu_custom_call.1} parent=1 // loop_footer
      %s25 = sadd.s32 1, %s21
    $region7: #{tpu_custom_call.1} parent=1 // loop_footer_branch
      %20 = sbr.rel target = $region3
    $region8: #{tpu_custom_call.1} parent=1 // loop_exit
      _
    %2673 = vsyncpa [#allocation4], 1
    %s2674 = scalar_lea.sflag [#allocation4], 1
    %2675 = vsyncpa %s2674, 1
    %2676 = vsyncpa [#allocation7], 1
    %2677 = vsyncpa [#allocation10], 1
    %s2678 = scalar_lea.sflag [#allocation10], 1
    %2679 = vsyncpa %s2678, 1
    %2680 = vsyncpa [#allocation5], 1
    %s2681 = scalar_lea.sflag [#allocation5], 1
    %2682 = vsyncpa %s2681, 1

</llo_original>
